<compile_context>
chip_gen: v7x
topology: tpu7x:2x2x1
jax: 0.10.0
libtpu: 0.0.40
codegen_flags: <defaults>
</compile_context>

<pallas_src>
import functools

import jax
import jax.numpy as jnp
import numpy as np
from jax.experimental import pallas as pl
from jax.experimental.pallas import tpu as pltpu


# ---------------------------------------------------------------------------
# Fused kernel: conv (kt accumulated matmuls over pre-packed K = kh*kw*Cin)
#               + BN(bias) + ReLU + MaxPool3d(1,3,3)/(1,2,2)/(0,1,1)
# ---------------------------------------------------------------------------
def _stem_kernel(x_ref, w_ref, b_ref, o_ref, *, kt, st, bT, Ho, Hp, Wp, Cout):
    """One grid step = bT output frames of one sample.

    x_ref: (Tp, M, K)        bf16, M = Ho*Wo rows ordered (ho, wo-parity, wp),
                             K = kh*kw*Cin packed patch values.  Resident
                             across the whole t grid axis.
    w_ref: (kt, K, Cout)     bf16, BN scale folded in.
    b_ref: (1, Cout)         f32 folded BN bias.
    o_ref: (bT, Hp, Wp*Cout) f32, lane-dense minor dim.
    """
    tb = pl.program_id(1)
    for f in range(bT):                                   # static unroll
        t0 = (tb * bT + f) * st                           # first temporal tap
        # ---- Conv3d: kt accumulated MXU matmuls (no im2col concat).
        acc = jnp.dot(x_ref[t0], w_ref[0], preferred_element_type=jnp.float32)
        for dt in range(1, kt):
            acc = acc + jnp.dot(x_ref[t0 + dt], w_ref[dt],
                                preferred_element_type=jnp.float32)
        y = jnp.maximum(acc + b_ref[...], 0.0)            # folded BN bias + ReLU

        # ---- MaxPool3d kernel=(1,3,3) stride=(1,2,2) pad=(0,1,1), in registers.
        # Rows are ordered (ho, parity, wp) so the stride-2 W downsample is a
        # free split; zero padding is valid because y >= 0 after ReLU.
        y = y.reshape(Ho, 2, Wp, Cout)
        ew, ow = y[:, 0], y[:, 1]                         # even / odd output cols
        if Wp > 1:
            ow_l = jnp.concatenate(
                [jnp.zeros_like(ow[:, :1]), ow[:, :-1]], axis=1)   # ow[wp-1]
        else:
            ow_l = jnp.zeros_like(ow)
        mw = jnp.maximum(jnp.maximum(ew, ow), ow_l)       # (Ho, Wp, Cout)

        mh = mw.reshape(Hp, 2, Wp, Cout)                  # even/odd rows (outer)
        eh, oh = mh[:, 0], mh[:, 1]
        if Hp > 1:
            oh_u = jnp.concatenate(
                [jnp.zeros_like(oh[:1]), oh[:-1]], axis=0)          # oh[hp-1]
        else:
            oh_u = jnp.zeros_like(oh)
        out = jnp.maximum(jnp.maximum(eh, oh), oh_u)      # (Hp, Wp, Cout)

        # Lane-dense store: minor dim = Wp*Cout.
        o_ref[f] = out.reshape(Hp, Wp * Cout).astype(o_ref.dtype)


# ---------------------------------------------------------------------------
# Full ResNetBasicStem forward
# ---------------------------------------------------------------------------
def resnet_basic_stem_forward(x, params, kernel, stride, padding, eps=1e-5):
    """x: (N, C_in, T, H, W) float32 (PyTorch NCTHW). Returns NCTHW."""
    w = params["conv_w"]                                  # (Cout, Cin, kt, kh, kw)
    kt, kh, kw = kernel
    st, sh, sw = stride
    pt, ph, pw = padding
    N, Cin, T, H, W = x.shape
    Cout = w.shape[0]

    To = (T + 2 * pt - kt) // st + 1
    Ho = (H + 2 * ph - kh) // sh + 1
    Wo = (W + 2 * pw - kw) // sw + 1
    # Pool epilogue (parity splits) assumes even conv output H/W (true for the
    # standard X3D stem geometries, e.g. 224^2 -> 112^2 and the test 16^2 -> 8^2).
    assert Ho % 2 == 0 and Wo % 2 == 0, "pool epilogue assumes even conv H/W"
    Hp, Wp = Ho // 2, Wo // 2                             # (1,3,3)/(1,2,2)/(0,1,1)
    Tp = T + 2 * pt
    K = kh * kw * Cin
    M = Ho * Wo

    # ---- input-sized wrapper glue: NCTHW -> NTHWC (bf16), conv zero padding,
    #      pre-pack kh*kw*Cin patch values per output position (K-minor,
    #      ~2.25x blow-up), output columns ordered [even | odd].
    xl = jnp.transpose(x, (0, 2, 3, 4, 1)).astype(jnp.bfloat16)    # (N,T,H,W,Cin)
    xp = jnp.pad(xl, ((0, 0), (pt, pt), (ph, ph), (pw, pw), (0, 0)))
    per_par = []
    for p in range(2):                                    # output-column parity
        taps = []
        for dh in range(kh):
            for dw in range(kw):
                h0, h1 = dh, dh + (Ho - 1) * sh + 1
                w0 = dw + p * sw
                w1 = w0 + (Wp - 1) * 2 * sw + 1
                taps.append(xp[:, :, h0:h1:sh, w0:w1:2 * sw, :])   # (N,Tp,Ho,Wp,Cin)
        per_par.append(jnp.stack(taps, axis=-2).reshape(N, Tp, Ho, Wp, K))
    xs = jnp.stack(per_par, axis=3).reshape(N, Tp, M, K)  # rows = (ho, parity, wp)

    # ---- fold inference-mode BatchNorm into the weights + a single bias row.
    scale = params["bn_gamma"] / jnp.sqrt(params["bn_var"] + eps)
    bias = params["bn_beta"] - params["bn_mean"] * scale
    w_mat = (jnp.transpose(w, (2, 3, 4, 1, 0)).reshape(kt, K, Cout)
             * scale[None, None, :]).astype(jnp.bfloat16)          # (kt, K, Cout)
    b_row = bias.reshape(1, Cout).astype(jnp.float32)

    bT = next(b for b in (4, 2, 1) if To % b == 0)        # output frames per step

    kern = functools.partial(_stem_kernel, kt=kt, st=st, bT=bT,
                             Ho=Ho, Hp=Hp, Wp=Wp, Cout=Cout)

    # Explicit VMEM budget (double-buffered blocks + weights + margin).
    def _pad_up(v, m):
        return ((v + m - 1) // m) * m

    in_block = Tp * _pad_up(M, 16) * _pad_up(K, 128) * 2
    out_block = bT * _pad_up(Hp, 8) * _pad_up(Wp * Cout, 128) * 4
    w_bytes = kt * _pad_up(K, 16) * _pad_up(Cout, 128) * 2
    vmem_limit = int(min(96 * 2**20,
                         max(32 * 2**20,
                             2 * in_block + 2 * out_block + w_bytes + (4 << 20))))

    out = pl.pallas_call(
        kern,
        out_shape=jax.ShapeDtypeStruct((N, To, Hp, Wp * Cout), jnp.float32),
        grid=(N, To // bT),
        in_specs=[
            # Single de-duplicated input stream; index_map constant along t ->
            # the per-sample block stays VMEM-resident across the t axis and is
            # only re-DMA'd when n changes.
            pl.BlockSpec((None, Tp, M, K), lambda n, t: (n, 0, 0, 0)),
            pl.BlockSpec((kt, K, Cout), lambda n, t: (0, 0, 0)),
            pl.BlockSpec((1, Cout), lambda n, t: (0, 0)),
        ],
        out_specs=pl.BlockSpec((None, bT, Hp, Wp * Cout),
                               lambda n, t: (n, t, 0, 0)),
        compiler_params=pltpu.CompilerParams(
            dimension_semantics=("parallel", "parallel"),
            vmem_limit_bytes=vmem_limit),
    )(xs, w_mat, b_row)

    # output-sized glue back to PyTorch NCTHW
    out = out.reshape(N, To, Hp, Wp, Cout)
    return jnp.transpose(out, (0, 4, 1, 2, 3))            # (N, Cout, To, Hp, Wp)


# ---------------------------------------------------------------------------
# Pure-JAX reference (for correctness check)
# ---------------------------------------------------------------------------
def reference_forward(x, params, kernel, stride, padding, eps=1e-5):
    w = params["conv_w"]
    y = jax.lax.conv_general_dilated(
        x, w,
        window_strides=tuple(stride),
        padding=[(padding[0],) * 2, (padding[1],) * 2, (padding[2],) * 2],
        dimension_numbers=("NCDHW", "OIDHW", "NCDHW"),
    )
    scale = params["bn_gamma"] / jnp.sqrt(params["bn_var"] + eps)
    bias = params["bn_beta"] - params["bn_mean"] * scale
    y = y * scale[None, :, None, None, None] + bias[None, :, None, None, None]
    y = jnp.maximum(y, 0.0)
    z = jax.lax.reduce_window(
        y, -jnp.inf, jax.lax.max,
        window_dimensions=(1, 1, 1, 3, 3),
        window_strides=(1, 1, 1, 2, 2),
        padding=[(0, 0), (0, 0), (0, 0), (1, 1), (1, 1)],
    )
    return z


if __name__ == "__main__":
    # Module config (small, consistent with ResNetBasicStem usage)
    dim_in, dim_out = 3, 8
    kernel = [3, 3, 3]
    stride = [1, 2, 2]
    padding = [1, 1, 1]
    eps = 1e-5

    key = jax.random.PRNGKey(0)
    k_w, k_x = jax.random.split(key)

    params = {
        "conv_w": 0.1 * jax.random.normal(
            k_w, (dim_out, dim_in, kernel[0], kernel[1], kernel[2]), jnp.float32),
        "bn_gamma": 1.0 + 0.1 * jnp.arange(dim_out, dtype=jnp.float32),
        "bn_beta": 0.05 * jnp.arange(dim_out, dtype=jnp.float32) - 0.2,
        "bn_mean": 0.01 * jnp.arange(dim_out, dtype=jnp.float32),
        "bn_var": 1.0 + 0.02 * jnp.arange(dim_out, dtype=jnp.float32),
    }

    # Input in PyTorch NCTHW layout: (N, C_in, T, H, W)
    x = jax.random.normal(k_x, (2, dim_in, 4, 16, 16), jnp.float32)

    fwd = jax.jit(functools.partial(
        resnet_basic_stem_forward, kernel=kernel, stride=stride,
        padding=padding, eps=eps))
    out = fwd(x, params)
    out = jax.block_until_ready(out)

    ref = reference_forward(x, params, kernel, stride, padding, eps)
    ref = jax.block_until_ready(ref)

    assert out.shape == ref.shape, (out.shape, ref.shape)
    np.testing.assert_allclose(np.asarray(out), np.asarray(ref),
                               rtol=2e-2, atol=2e-2)
    print("KERNEL_OK")
</pallas_src>

<mosaic_0001>
module attributes {stable_mosaic.version = 11 : i64} {
  func.func @_stem_kernel(%arg0: i32, %arg1: i32, %arg2: memref<1x6x64x27xbf16, #tpu.memory_space<vmem>>, %arg3: memref<3x27x8xbf16, #tpu.memory_space<vmem>>, %arg4: memref<1x8xf32, #tpu.memory_space<vmem>>, %arg5: memref<1x4x4x32xf32, #tpu.memory_space<vmem>>) attributes {dimension_semantics = [#tpu.dimension_semantics<parallel>, #tpu.dimension_semantics<parallel>], iteration_bounds = array<i64: 2, 1>, scalar_prefetch = 0 : i64, scratch_operands = 0 : i64, tpu.core_type = #tpu.core_type<tc>, window_params = [{transform_indices = @transform_0, window_bounds = array<i64: 1, 6, 64, 27>}, {pipeline_mode = #tpu.pipeline_mode<synchronous>, transform_indices = @transform_1, window_bounds = array<i64: 3, 27, 8>}, {pipeline_mode = #tpu.pipeline_mode<synchronous>, transform_indices = @transform_2, window_bounds = array<i64: 1, 8>}, {transform_indices = @transform_3, window_bounds = array<i64: 1, 4, 4, 32>}]} {
    %c4_i32 = arith.constant 4 : i32
    %0 = arith.muli %arg1, %c4_i32 : i32
    %c0_i32 = arith.constant 0 : i32
    %1 = arith.addi %0, %c0_i32 : i32
    %c1_i32 = arith.constant 1 : i32
    %2 = arith.muli %1, %c1_i32 : i32
    %c0 = arith.constant 0 : index
    %3 = arith.index_cast %2 : i32 to index
    %c0_0 = arith.constant 0 : index
    %c0_1 = arith.constant 0 : index
    %4 = vector.load %arg2[%c0, %3, %c0_0, %c0_1] : memref<1x6x64x27xbf16, #tpu.memory_space<vmem>>, vector<1x1x64x27xbf16>
    %5 = vector.shape_cast %4 : vector<1x1x64x27xbf16> to vector<64x27xbf16>
    %c0_2 = arith.constant 0 : index
    %c0_3 = arith.constant 0 : index
    %c0_4 = arith.constant 0 : index
    %6 = vector.load %arg3[%c0_2, %c0_3, %c0_4] : memref<3x27x8xbf16, #tpu.memory_space<vmem>>, vector<1x27x8xbf16>
    %7 = vector.shape_cast %6 : vector<1x27x8xbf16> to vector<27x8xbf16>
    %cst = arith.constant dense<0.000000e+00> : vector<64x8xf32>
    %8 = tpu.matmul %5, %7, %cst {dimension_numbers = #tpu.dot_dimension_numbers<[1], [0], [0], [1], [0, 0, 1, 1], [], []>} : vector<64x27xbf16>, vector<27x8xbf16>, vector<64x8xf32> -> vector<64x8xf32>
    %c1_i32_5 = arith.constant 1 : i32
    %9 = arith.addi %2, %c1_i32_5 : i32
    %c0_6 = arith.constant 0 : index
    %10 = arith.index_cast %9 : i32 to index
    %c0_7 = arith.constant 0 : index
    %c0_8 = arith.constant 0 : index
    %11 = vector.load %arg2[%c0_6, %10, %c0_7, %c0_8] : memref<1x6x64x27xbf16, #tpu.memory_space<vmem>>, vector<1x1x64x27xbf16>
    %12 = vector.shape_cast %11 : vector<1x1x64x27xbf16> to vector<64x27xbf16>
    %c1 = arith.constant 1 : index
    %c0_9 = arith.constant 0 : index
    %c0_10 = arith.constant 0 : index
    %13 = vector.load %arg3[%c1, %c0_9, %c0_10] : memref<3x27x8xbf16, #tpu.memory_space<vmem>>, vector<1x27x8xbf16>
    %14 = vector.shape_cast %13 : vector<1x27x8xbf16> to vector<27x8xbf16>
    %cst_11 = arith.constant dense<0.000000e+00> : vector<64x8xf32>
    %15 = tpu.matmul %12, %14, %cst_11 {dimension_numbers = #tpu.dot_dimension_numbers<[1], [0], [0], [1], [0, 0, 1, 1], [], []>} : vector<64x27xbf16>, vector<27x8xbf16>, vector<64x8xf32> -> vector<64x8xf32>
    %16 = arith.addf %8, %15 : vector<64x8xf32>
    %c2_i32 = arith.constant 2 : i32
    %17 = arith.addi %2, %c2_i32 : i32
    %c0_12 = arith.constant 0 : index
    %18 = arith.index_cast %17 : i32 to index
    %c0_13 = arith.constant 0 : index
    %c0_14 = arith.constant 0 : index
    %19 = vector.load %arg2[%c0_12, %18, %c0_13, %c0_14] : memref<1x6x64x27xbf16, #tpu.memory_space<vmem>>, vector<1x1x64x27xbf16>
    %20 = vector.shape_cast %19 : vector<1x1x64x27xbf16> to vector<64x27xbf16>
    %c2 = arith.constant 2 : index
    %c0_15 = arith.constant 0 : index
    %c0_16 = arith.constant 0 : index
    %21 = vector.load %arg3[%c2, %c0_15, %c0_16] : memref<3x27x8xbf16, #tpu.memory_space<vmem>>, vector<1x27x8xbf16>
    %22 = vector.shape_cast %21 : vector<1x27x8xbf16> to vector<27x8xbf16>
    %cst_17 = arith.constant dense<0.000000e+00> : vector<64x8xf32>
    %23 = tpu.matmul %20, %22, %cst_17 {dimension_numbers = #tpu.dot_dimension_numbers<[1], [0], [0], [1], [0, 0, 1, 1], [], []>} : vector<64x27xbf16>, vector<27x8xbf16>, vector<64x8xf32> -> vector<64x8xf32>
    %24 = arith.addf %16, %23 : vector<64x8xf32>
    %c0_18 = arith.constant 0 : index
    %c0_19 = arith.constant 0 : index
    %25 = vector.load %arg4[%c0_18, %c0_19] : memref<1x8xf32, #tpu.memory_space<vmem>>, vector<1x8xf32>
    %26 = vector.broadcast %25 : vector<1x8xf32> to vector<64x8xf32>
    %27 = arith.addf %24, %26 : vector<64x8xf32>
    %cst_20 = arith.constant 0.000000e+00 : f32
    %28 = vector.broadcast %cst_20 : f32 to vector<64x8xf32>
    %29 = arith.maximumf %27, %28 : vector<64x8xf32>
    %30 = vector.shape_cast %29 : vector<64x8xf32> to vector<8x2x4x8xf32>
    %31 = vector.extract_strided_slice %30 {offsets = [0, 0, 0, 0], sizes = [8, 1, 4, 8], strides = [1, 1, 1, 1]} : vector<8x2x4x8xf32> to vector<8x1x4x8xf32>
    %32 = vector.shape_cast %31 : vector<8x1x4x8xf32> to vector<8x4x8xf32>
    %33 = vector.extract_strided_slice %30 {offsets = [0, 1, 0, 0], sizes = [8, 1, 4, 8], strides = [1, 1, 1, 1]} : vector<8x2x4x8xf32> to vector<8x1x4x8xf32>
    %34 = vector.shape_cast %33 : vector<8x1x4x8xf32> to vector<8x4x8xf32>
    %cst_21 = arith.constant 0.000000e+00 : f32
    %35 = vector.broadcast %cst_21 : f32 to vector<8x1x8xf32>
    %36 = vector.extract_strided_slice %34 {offsets = [0, 0, 0], sizes = [8, 3, 8], strides = [1, 1, 1]} : vector<8x4x8xf32> to vector<8x3x8xf32>
    %37 = tpu.concatenate %35, %36 in 1 : vector<8x1x8xf32>, vector<8x3x8xf32> -> vector<8x4x8xf32>
    %38 = arith.maximumf %32, %34 : vector<8x4x8xf32>
    %39 = arith.maximumf %38, %37 : vector<8x4x8xf32>
    %40 = vector.shape_cast %39 : vector<8x4x8xf32> to vector<4x2x4x8xf32>
    %41 = vector.extract_strided_slice %40 {offsets = [0, 0, 0, 0], sizes = [4, 1, 4, 8], strides = [1, 1, 1, 1]} : vector<4x2x4x8xf32> to vector<4x1x4x8xf32>
    %42 = vector.shape_cast %41 : vector<4x1x4x8xf32> to vector<4x4x8xf32>
    %43 = vector.extract_strided_slice %40 {offsets = [0, 1, 0, 0], sizes = [4, 1, 4, 8], strides = [1, 1, 1, 1]} : vector<4x2x4x8xf32> to vector<4x1x4x8xf32>
    %44 = vector.shape_cast %43 : vector<4x1x4x8xf32> to vector<4x4x8xf32>
    %cst_22 = arith.constant 0.000000e+00 : f32
    %45 = vector.broadcast %cst_22 : f32 to vector<1x4x8xf32>
    %46 = vector.extract_strided_slice %44 {offsets = [0, 0, 0], sizes = [3, 4, 8], strides = [1, 1, 1]} : vector<4x4x8xf32> to vector<3x4x8xf32>
    %47 = tpu.concatenate %45, %46 in 0 : vector<1x4x8xf32>, vector<3x4x8xf32> -> vector<4x4x8xf32>
    %48 = arith.maximumf %42, %44 : vector<4x4x8xf32>
    %49 = arith.maximumf %48, %47 : vector<4x4x8xf32>
    %50 = vector.shape_cast %49 : vector<4x4x8xf32> to vector<4x32xf32>
    %c0_23 = arith.constant 0 : index
    %c0_24 = arith.constant 0 : index
    %c0_25 = arith.constant 0 : index
    %c0_26 = arith.constant 0 : index
    %51 = vector.load %arg5[%c0_23, %c0_24, %c0_25, %c0_26] : memref<1x4x4x32xf32, #tpu.memory_space<vmem>>, vector<1x1x4x32xf32>
    %52 = vector.shape_cast %51 : vector<1x1x4x32xf32> to vector<4x32xf32>
    %53 = vector.shape_cast %50 : vector<4x32xf32> to vector<1x1x4x32xf32>
    tpu.vector_store %arg5[%c0_23, %c0_24, %c0_25, %c0_26], %53 {strides = array<i32>} : memref<1x4x4x32xf32, #tpu.memory_space<vmem>>, vector<1x1x4x32xf32>,
    %c4_i32_27 = arith.constant 4 : i32
    %54 = arith.muli %arg1, %c4_i32_27 : i32
    %c1_i32_28 = arith.constant 1 : i32
    %55 = arith.addi %54, %c1_i32_28 : i32
    %c1_i32_29 = arith.constant 1 : i32
    %56 = arith.muli %55, %c1_i32_29 : i32
    %c0_30 = arith.constant 0 : index
    %57 = arith.index_cast %56 : i32 to index
    %c0_31 = arith.constant 0 : index
    %c0_32 = arith.constant 0 : index
    %58 = vector.load %arg2[%c0_30, %57, %c0_31, %c0_32] : memref<1x6x64x27xbf16, #tpu.memory_space<vmem>>, vector<1x1x64x27xbf16>
    %59 = vector.shape_cast %58 : vector<1x1x64x27xbf16> to vector<64x27xbf16>
    %c0_33 = arith.constant 0 : index
    %c0_34 = arith.constant 0 : index
    %c0_35 = arith.constant 0 : index
    %60 = vector.load %arg3[%c0_33, %c0_34, %c0_35] : memref<3x27x8xbf16, #tpu.memory_space<vmem>>, vector<1x27x8xbf16>
    %61 = vector.shape_cast %60 : vector<1x27x8xbf16> to vector<27x8xbf16>
    %cst_36 = arith.constant dense<0.000000e+00> : vector<64x8xf32>
    %62 = tpu.matmul %59, %61, %cst_36 {dimension_numbers = #tpu.dot_dimension_numbers<[1], [0], [0], [1], [0, 0, 1, 1], [], []>} : vector<64x27xbf16>, vector<27x8xbf16>, vector<64x8xf32> -> vector<64x8xf32>
    %c1_i32_37 = arith.constant 1 : i32
    %63 = arith.addi %56, %c1_i32_37 : i32
    %c0_38 = arith.constant 0 : index
    %64 = arith.index_cast %63 : i32 to index
    %c0_39 = arith.constant 0 : index
    %c0_40 = arith.constant 0 : index
    %65 = vector.load %arg2[%c0_38, %64, %c0_39, %c0_40] : memref<1x6x64x27xbf16, #tpu.memory_space<vmem>>, vector<1x1x64x27xbf16>
    %66 = vector.shape_cast %65 : vector<1x1x64x27xbf16> to vector<64x27xbf16>
    %c1_41 = arith.constant 1 : index
    %c0_42 = arith.constant 0 : index
    %c0_43 = arith.constant 0 : index
    %67 = vector.load %arg3[%c1_41, %c0_42, %c0_43] : memref<3x27x8xbf16, #tpu.memory_space<vmem>>, vector<1x27x8xbf16>
    %68 = vector.shape_cast %67 : vector<1x27x8xbf16> to vector<27x8xbf16>
    %cst_44 = arith.constant dense<0.000000e+00> : vector<64x8xf32>
    %69 = tpu.matmul %66, %68, %cst_44 {dimension_numbers = #tpu.dot_dimension_numbers<[1], [0], [0], [1], [0, 0, 1, 1], [], []>} : vector<64x27xbf16>, vector<27x8xbf16>, vector<64x8xf32> -> vector<64x8xf32>
    %70 = arith.addf %62, %69 : vector<64x8xf32>
    %c2_i32_45 = arith.constant 2 : i32
    %71 = arith.addi %56, %c2_i32_45 : i32
    %c0_46 = arith.constant 0 : index
    %72 = arith.index_cast %71 : i32 to index
    %c0_47 = arith.constant 0 : index
    %c0_48 = arith.constant 0 : index
    %73 = vector.load %arg2[%c0_46, %72, %c0_47, %c0_48] : memref<1x6x64x27xbf16, #tpu.memory_space<vmem>>, vector<1x1x64x27xbf16>
    %74 = vector.shape_cast %73 : vector<1x1x64x27xbf16> to vector<64x27xbf16>
    %c2_49 = arith.constant 2 : index
    %c0_50 = arith.constant 0 : index
    %c0_51 = arith.constant 0 : index
    %75 = vector.load %arg3[%c2_49, %c0_50, %c0_51] : memref<3x27x8xbf16, #tpu.memory_space<vmem>>, vector<1x27x8xbf16>
    %76 = vector.shape_cast %75 : vector<1x27x8xbf16> to vector<27x8xbf16>
    %cst_52 = arith.constant dense<0.000000e+00> : vector<64x8xf32>
    %77 = tpu.matmul %74, %76, %cst_52 {dimension_numbers = #tpu.dot_dimension_numbers<[1], [0], [0], [1], [0, 0, 1, 1], [], []>} : vector<64x27xbf16>, vector<27x8xbf16>, vector<64x8xf32> -> vector<64x8xf32>
    %78 = arith.addf %70, %77 : vector<64x8xf32>
    %c0_53 = arith.constant 0 : index
    %c0_54 = arith.constant 0 : index
    %79 = vector.load %arg4[%c0_53, %c0_54] : memref<1x8xf32, #tpu.memory_space<vmem>>, vector<1x8xf32>
    %80 = vector.broadcast %79 : vector<1x8xf32> to vector<64x8xf32>
    %81 = arith.addf %78, %80 : vector<64x8xf32>
    %cst_55 = arith.constant 0.000000e+00 : f32
    %82 = vector.broadcast %cst_55 : f32 to vector<64x8xf32>
    %83 = arith.maximumf %81, %82 : vector<64x8xf32>
    %84 = vector.shape_cast %83 : vector<64x8xf32> to vector<8x2x4x8xf32>
    %85 = vector.extract_strided_slice %84 {offsets = [0, 0, 0, 0], sizes = [8, 1, 4, 8], strides = [1, 1, 1, 1]} : vector<8x2x4x8xf32> to vector<8x1x4x8xf32>
    %86 = vector.shape_cast %85 : vector<8x1x4x8xf32> to vector<8x4x8xf32>
    %87 = vector.extract_strided_slice %84 {offsets = [0, 1, 0, 0], sizes = [8, 1, 4, 8], strides = [1, 1, 1, 1]} : vector<8x2x4x8xf32> to vector<8x1x4x8xf32>
    %88 = vector.shape_cast %87 : vector<8x1x4x8xf32> to vector<8x4x8xf32>
    %cst_56 = arith.constant 0.000000e+00 : f32
    %89 = vector.broadcast %cst_56 : f32 to vector<8x1x8xf32>
    %90 = vector.extract_strided_slice %88 {offsets = [0, 0, 0], sizes = [8, 3, 8], strides = [1, 1, 1]} : vector<8x4x8xf32> to vector<8x3x8xf32>
    %91 = tpu.concatenate %89, %90 in 1 : vector<8x1x8xf32>, vector<8x3x8xf32> -> vector<8x4x8xf32>
    %92 = arith.maximumf %86, %88 : vector<8x4x8xf32>
    %93 = arith.maximumf %92, %91 : vector<8x4x8xf32>
    %94 = vector.shape_cast %93 : vector<8x4x8xf32> to vector<4x2x4x8xf32>
    %95 = vector.extract_strided_slice %94 {offsets = [0, 0, 0, 0], sizes = [4, 1, 4, 8], strides = [1, 1, 1, 1]} : vector<4x2x4x8xf32> to vector<4x1x4x8xf32>
    %96 = vector.shape_cast %95 : vector<4x1x4x8xf32> to vector<4x4x8xf32>
    %97 = vector.extract_strided_slice %94 {offsets = [0, 1, 0, 0], sizes = [4, 1, 4, 8], strides = [1, 1, 1, 1]} : vector<4x2x4x8xf32> to vector<4x1x4x8xf32>
    %98 = vector.shape_cast %97 : vector<4x1x4x8xf32> to vector<4x4x8xf32>
    %cst_57 = arith.constant 0.000000e+00 : f32
    %99 = vector.broadcast %cst_57 : f32 to vector<1x4x8xf32>
    %100 = vector.extract_strided_slice %98 {offsets = [0, 0, 0], sizes = [3, 4, 8], strides = [1, 1, 1]} : vector<4x4x8xf32> to vector<3x4x8xf32>
    %101 = tpu.concatenate %99, %100 in 0 : vector<1x4x8xf32>, vector<3x4x8xf32> -> vector<4x4x8xf32>
    %102 = arith.maximumf %96, %98 : vector<4x4x8xf32>
    %103 = arith.maximumf %102, %101 : vector<4x4x8xf32>
    %104 = vector.shape_cast %103 : vector<4x4x8xf32> to vector<4x32xf32>
    %c0_58 = arith.constant 0 : index
    %c1_59 = arith.constant 1 : index
    %c0_60 = arith.constant 0 : index
    %c0_61 = arith.constant 0 : index
    %105 = vector.load %arg5[%c0_58, %c1_59, %c0_60, %c0_61] : memref<1x4x4x32xf32, #tpu.memory_space<vmem>>, vector<1x1x4x32xf32>
    %106 = vector.shape_cast %105 : vector<1x1x4x32xf32> to vector<4x32xf32>
    %107 = vector.shape_cast %104 : vector<4x32xf32> to vector<1x1x4x32xf32>
    tpu.vector_store %arg5[%c0_58, %c1_59, %c0_60, %c0_61], %107 {strides = array<i32>} : memref<1x4x4x32xf32, #tpu.memory_space<vmem>>, vector<1x1x4x32xf32>,
    %c4_i32_62 = arith.constant 4 : i32
    %108 = arith.muli %arg1, %c4_i32_62 : i32
    %c2_i32_63 = arith.constant 2 : i32
    %109 = arith.addi %108, %c2_i32_63 : i32
    %c1_i32_64 = arith.constant 1 : i32
    %110 = arith.muli %109, %c1_i32_64 : i32
    %c0_65 = arith.constant 0 : index
    %111 = arith.index_cast %110 : i32 to index
    %c0_66 = arith.constant 0 : index
    %c0_67 = arith.constant 0 : index
    %112 = vector.load %arg2[%c0_65, %111, %c0_66, %c0_67] : memref<1x6x64x27xbf16, #tpu.memory_space<vmem>>, vector<1x1x64x27xbf16>
    %113 = vector.shape_cast %112 : vector<1x1x64x27xbf16> to vector<64x27xbf16>
    %c0_68 = arith.constant 0 : index
    %c0_69 = arith.constant 0 : index
    %c0_70 = arith.constant 0 : index
    %114 = vector.load %arg3[%c0_68, %c0_69, %c0_70] : memref<3x27x8xbf16, #tpu.memory_space<vmem>>, vector<1x27x8xbf16>
    %115 = vector.shape_cast %114 : vector<1x27x8xbf16> to vector<27x8xbf16>
    %cst_71 = arith.constant dense<0.000000e+00> : vector<64x8xf32>
    %116 = tpu.matmul %113, %115, %cst_71 {dimension_numbers = #tpu.dot_dimension_numbers<[1], [0], [0], [1], [0, 0, 1, 1], [], []>} : vector<64x27xbf16>, vector<27x8xbf16>, vector<64x8xf32> -> vector<64x8xf32>
    %c1_i32_72 = arith.constant 1 : i32
    %117 = arith.addi %110, %c1_i32_72 : i32
    %c0_73 = arith.constant 0 : index
    %118 = arith.index_cast %117 : i32 to index
    %c0_74 = arith.constant 0 : index
    %c0_75 = arith.constant 0 : index
    %119 = vector.load %arg2[%c0_73, %118, %c0_74, %c0_75] : memref<1x6x64x27xbf16, #tpu.memory_space<vmem>>, vector<1x1x64x27xbf16>
    %120 = vector.shape_cast %119 : vector<1x1x64x27xbf16> to vector<64x27xbf16>
    %c1_76 = arith.constant 1 : index
    %c0_77 = arith.constant 0 : index
    %c0_78 = arith.constant 0 : index
    %121 = vector.load %arg3[%c1_76, %c0_77, %c0_78] : memref<3x27x8xbf16, #tpu.memory_space<vmem>>, vector<1x27x8xbf16>
    %122 = vector.shape_cast %121 : vector<1x27x8xbf16> to vector<27x8xbf16>
    %cst_79 = arith.constant dense<0.000000e+00> : vector<64x8xf32>
    %123 = tpu.matmul %120, %122, %cst_79 {dimension_numbers = #tpu.dot_dimension_numbers<[1], [0], [0], [1], [0, 0, 1, 1], [], []>} : vector<64x27xbf16>, vector<27x8xbf16>, vector<64x8xf32> -> vector<64x8xf32>
    %124 = arith.addf %116, %123 : vector<64x8xf32>
    %c2_i32_80 = arith.constant 2 : i32
    %125 = arith.addi %110, %c2_i32_80 : i32
    %c0_81 = arith.constant 0 : index
    %126 = arith.index_cast %125 : i32 to index
    %c0_82 = arith.constant 0 : index
    %c0_83 = arith.constant 0 : index
    %127 = vector.load %arg2[%c0_81, %126, %c0_82, %c0_83] : memref<1x6x64x27xbf16, #tpu.memory_space<vmem>>, vector<1x1x64x27xbf16>
    %128 = vector.shape_cast %127 : vector<1x1x64x27xbf16> to vector<64x27xbf16>
    %c2_84 = arith.constant 2 : index
    %c0_85 = arith.constant 0 : index
    %c0_86 = arith.constant 0 : index
    %129 = vector.load %arg3[%c2_84, %c0_85, %c0_86] : memref<3x27x8xbf16, #tpu.memory_space<vmem>>, vector<1x27x8xbf16>
    %130 = vector.shape_cast %129 : vector<1x27x8xbf16> to vector<27x8xbf16>
    %cst_87 = arith.constant dense<0.000000e+00> : vector<64x8xf32>
    %131 = tpu.matmul %128, %130, %cst_87 {dimension_numbers = #tpu.dot_dimension_numbers<[1], [0], [0], [1], [0, 0, 1, 1], [], []>} : vector<64x27xbf16>, vector<27x8xbf16>, vector<64x8xf32> -> vector<64x8xf32>
    %132 = arith.addf %124, %131 : vector<64x8xf32>
    %c0_88 = arith.constant 0 : index
    %c0_89 = arith.constant 0 : index
    %133 = vector.load %arg4[%c0_88, %c0_89] : memref<1x8xf32, #tpu.memory_space<vmem>>, vector<1x8xf32>
    %134 = vector.broadcast %133 : vector<1x8xf32> to vector<64x8xf32>
    %135 = arith.addf %132, %134 : vector<64x8xf32>
    %cst_90 = arith.constant 0.000000e+00 : f32
    %136 = vector.broadcast %cst_90 : f32 to vector<64x8xf32>
    %137 = arith.maximumf %135, %136 : vector<64x8xf32>
    %138 = vector.shape_cast %137 : vector<64x8xf32> to vector<8x2x4x8xf32>
    %139 = vector.extract_strided_slice %138 {offsets = [0, 0, 0, 0], sizes = [8, 1, 4, 8], strides = [1, 1, 1, 1]} : vector<8x2x4x8xf32> to vector<8x1x4x8xf32>
    %140 = vector.shape_cast %139 : vector<8x1x4x8xf32> to vector<8x4x8xf32>
    %141 = vector.extract_strided_slice %138 {offsets = [0, 1, 0, 0], sizes = [8, 1, 4, 8], strides = [1, 1, 1, 1]} : vector<8x2x4x8xf32> to vector<8x1x4x8xf32>
    %142 = vector.shape_cast %141 : vector<8x1x4x8xf32> to vector<8x4x8xf32>
    %cst_91 = arith.constant 0.000000e+00 : f32
    %143 = vector.broadcast %cst_91 : f32 to vector<8x1x8xf32>
    %144 = vector.extract_strided_slice %142 {offsets = [0, 0, 0], sizes = [8, 3, 8], strides = [1, 1, 1]} : vector<8x4x8xf32> to vector<8x3x8xf32>
    %145 = tpu.concatenate %143, %144 in 1 : vector<8x1x8xf32>, vector<8x3x8xf32> -> vector<8x4x8xf32>
    %146 = arith.maximumf %140, %142 : vector<8x4x8xf32>
    %147 = arith.maximumf %146, %145 : vector<8x4x8xf32>
    %148 = vector.shape_cast %147 : vector<8x4x8xf32> to vector<4x2x4x8xf32>
    %149 = vector.extract_strided_slice %148 {offsets = [0, 0, 0, 0], sizes = [4, 1, 4, 8], strides = [1, 1, 1, 1]} : vector<4x2x4x8xf32> to vector<4x1x4x8xf32>
    %150 = vector.shape_cast %149 : vector<4x1x4x8xf32> to vector<4x4x8xf32>
    %151 = vector.extract_strided_slice %148 {offsets = [0, 1, 0, 0], sizes = [4, 1, 4, 8], strides = [1, 1, 1, 1]} : vector<4x2x4x8xf32> to vector<4x1x4x8xf32>
    %152 = vector.shape_cast %151 : vector<4x1x4x8xf32> to vector<4x4x8xf32>
    %cst_92 = arith.constant 0.000000e+00 : f32
    %153 = vector.broadcast %cst_92 : f32 to vector<1x4x8xf32>
    %154 = vector.extract_strided_slice %152 {offsets = [0, 0, 0], sizes = [3, 4, 8], strides = [1, 1, 1]} : vector<4x4x8xf32> to vector<3x4x8xf32>
    %155 = tpu.concatenate %153, %154 in 0 : vector<1x4x8xf32>, vector<3x4x8xf32> -> vector<4x4x8xf32>
    %156 = arith.maximumf %150, %152 : vector<4x4x8xf32>
    %157 = arith.maximumf %156, %155 : vector<4x4x8xf32>
    %158 = vector.shape_cast %157 : vector<4x4x8xf32> to vector<4x32xf32>
    %c0_93 = arith.constant 0 : index
    %c2_94 = arith.constant 2 : index
    %c0_95 = arith.constant 0 : index
    %c0_96 = arith.constant 0 : index
    %159 = vector.load %arg5[%c0_93, %c2_94, %c0_95, %c0_96] : memref<1x4x4x32xf32, #tpu.memory_space<vmem>>, vector<1x1x4x32xf32>
    %160 = vector.shape_cast %159 : vector<1x1x4x32xf32> to vector<4x32xf32>
    %161 = vector.shape_cast %158 : vector<4x32xf32> to vector<1x1x4x32xf32>
    tpu.vector_store %arg5[%c0_93, %c2_94, %c0_95, %c0_96], %161 {strides = array<i32>} : memref<1x4x4x32xf32, #tpu.memory_space<vmem>>, vector<1x1x4x32xf32>,
    %c4_i32_97 = arith.constant 4 : i32
    %162 = arith.muli %arg1, %c4_i32_97 : i32
    %c3_i32 = arith.constant 3 : i32
    %163 = arith.addi %162, %c3_i32 : i32
    %c1_i32_98 = arith.constant 1 : i32
    %164 = arith.muli %163, %c1_i32_98 : i32
    %c0_99 = arith.constant 0 : index
    %165 = arith.index_cast %164 : i32 to index
    %c0_100 = arith.constant 0 : index
    %c0_101 = arith.constant 0 : index
    %166 = vector.load %arg2[%c0_99, %165, %c0_100, %c0_101] : memref<1x6x64x27xbf16, #tpu.memory_space<vmem>>, vector<1x1x64x27xbf16>
    %167 = vector.shape_cast %166 : vector<1x1x64x27xbf16> to vector<64x27xbf16>
    %c0_102 = arith.constant 0 : index
    %c0_103 = arith.constant 0 : index
    %c0_104 = arith.constant 0 : index
    %168 = vector.load %arg3[%c0_102, %c0_103, %c0_104] : memref<3x27x8xbf16, #tpu.memory_space<vmem>>, vector<1x27x8xbf16>
    %169 = vector.shape_cast %168 : vector<1x27x8xbf16> to vector<27x8xbf16>
    %cst_105 = arith.constant dense<0.000000e+00> : vector<64x8xf32>
    %170 = tpu.matmul %167, %169, %cst_105 {dimension_numbers = #tpu.dot_dimension_numbers<[1], [0], [0], [1], [0, 0, 1, 1], [], []>} : vector<64x27xbf16>, vector<27x8xbf16>, vector<64x8xf32> -> vector<64x8xf32>
    %c1_i32_106 = arith.constant 1 : i32
    %171 = arith.addi %164, %c1_i32_106 : i32
    %c0_107 = arith.constant 0 : index
    %172 = arith.index_cast %171 : i32 to index
    %c0_108 = arith.constant 0 : index
    %c0_109 = arith.constant 0 : index
    %173 = vector.load %arg2[%c0_107, %172, %c0_108, %c0_109] : memref<1x6x64x27xbf16, #tpu.memory_space<vmem>>, vector<1x1x64x27xbf16>
    %174 = vector.shape_cast %173 : vector<1x1x64x27xbf16> to vector<64x27xbf16>
    %c1_110 = arith.constant 1 : index
    %c0_111 = arith.constant 0 : index
    %c0_112 = arith.constant 0 : index
    %175 = vector.load %arg3[%c1_110, %c0_111, %c0_112] : memref<3x27x8xbf16, #tpu.memory_space<vmem>>, vector<1x27x8xbf16>
    %176 = vector.shape_cast %175 : vector<1x27x8xbf16> to vector<27x8xbf16>
    %cst_113 = arith.constant dense<0.000000e+00> : vector<64x8xf32>
    %177 = tpu.matmul %174, %176, %cst_113 {dimension_numbers = #tpu.dot_dimension_numbers<[1], [0], [0], [1], [0, 0, 1, 1], [], []>} : vector<64x27xbf16>, vector<27x8xbf16>, vector<64x8xf32> -> vector<64x8xf32>
    %178 = arith.addf %170, %177 : vector<64x8xf32>
    %c2_i32_114 = arith.constant 2 : i32
    %179 = arith.addi %164, %c2_i32_114 : i32
    %c0_115 = arith.constant 0 : index
    %180 = arith.index_cast %179 : i32 to index
    %c0_116 = arith.constant 0 : index
    %c0_117 = arith.constant 0 : index
    %181 = vector.load %arg2[%c0_115, %180, %c0_116, %c0_117] : memref<1x6x64x27xbf16, #tpu.memory_space<vmem>>, vector<1x1x64x27xbf16>
    %182 = vector.shape_cast %181 : vector<1x1x64x27xbf16> to vector<64x27xbf16>
    %c2_118 = arith.constant 2 : index
    %c0_119 = arith.constant 0 : index
    %c0_120 = arith.constant 0 : index
    %183 = vector.load %arg3[%c2_118, %c0_119, %c0_120] : memref<3x27x8xbf16, #tpu.memory_space<vmem>>, vector<1x27x8xbf16>
    %184 = vector.shape_cast %183 : vector<1x27x8xbf16> to vector<27x8xbf16>
    %cst_121 = arith.constant dense<0.000000e+00> : vector<64x8xf32>
    %185 = tpu.matmul %182, %184, %cst_121 {dimension_numbers = #tpu.dot_dimension_numbers<[1], [0], [0], [1], [0, 0, 1, 1], [], []>} : vector<64x27xbf16>, vector<27x8xbf16>, vector<64x8xf32> -> vector<64x8xf32>
    %186 = arith.addf %178, %185 : vector<64x8xf32>
    %c0_122 = arith.constant 0 : index
    %c0_123 = arith.constant 0 : index
    %187 = vector.load %arg4[%c0_122, %c0_123] : memref<1x8xf32, #tpu.memory_space<vmem>>, vector<1x8xf32>
    %188 = vector.broadcast %187 : vector<1x8xf32> to vector<64x8xf32>
    %189 = arith.addf %186, %188 : vector<64x8xf32>
    %cst_124 = arith.constant 0.000000e+00 : f32
    %190 = vector.broadcast %cst_124 : f32 to vector<64x8xf32>
    %191 = arith.maximumf %189, %190 : vector<64x8xf32>
    %192 = vector.shape_cast %191 : vector<64x8xf32> to vector<8x2x4x8xf32>
    %193 = vector.extract_strided_slice %192 {offsets = [0, 0, 0, 0], sizes = [8, 1, 4, 8], strides = [1, 1, 1, 1]} : vector<8x2x4x8xf32> to vector<8x1x4x8xf32>
    %194 = vector.shape_cast %193 : vector<8x1x4x8xf32> to vector<8x4x8xf32>
    %195 = vector.extract_strided_slice %192 {offsets = [0, 1, 0, 0], sizes = [8, 1, 4, 8], strides = [1, 1, 1, 1]} : vector<8x2x4x8xf32> to vector<8x1x4x8xf32>
    %196 = vector.shape_cast %195 : vector<8x1x4x8xf32> to vector<8x4x8xf32>
    %cst_125 = arith.constant 0.000000e+00 : f32
    %197 = vector.broadcast %cst_125 : f32 to vector<8x1x8xf32>
    %198 = vector.extract_strided_slice %196 {offsets = [0, 0, 0], sizes = [8, 3, 8], strides = [1, 1, 1]} : vector<8x4x8xf32> to vector<8x3x8xf32>
    %199 = tpu.concatenate %197, %198 in 1 : vector<8x1x8xf32>, vector<8x3x8xf32> -> vector<8x4x8xf32>
    %200 = arith.maximumf %194, %196 : vector<8x4x8xf32>
    %201 = arith.maximumf %200, %199 : vector<8x4x8xf32>
    %202 = vector.shape_cast %201 : vector<8x4x8xf32> to vector<4x2x4x8xf32>
    %203 = vector.extract_strided_slice %202 {offsets = [0, 0, 0, 0], sizes = [4, 1, 4, 8], strides = [1, 1, 1, 1]} : vector<4x2x4x8xf32> to vector<4x1x4x8xf32>
    %204 = vector.shape_cast %203 : vector<4x1x4x8xf32> to vector<4x4x8xf32>
    %205 = vector.extract_strided_slice %202 {offsets = [0, 1, 0, 0], sizes = [4, 1, 4, 8], strides = [1, 1, 1, 1]} : vector<4x2x4x8xf32> to vector<4x1x4x8xf32>
    %206 = vector.shape_cast %205 : vector<4x1x4x8xf32> to vector<4x4x8xf32>
    %cst_126 = arith.constant 0.000000e+00 : f32
    %207 = vector.broadcast %cst_126 : f32 to vector<1x4x8xf32>
    %208 = vector.extract_strided_slice %206 {offsets = [0, 0, 0], sizes = [3, 4, 8], strides = [1, 1, 1]} : vector<4x4x8xf32> to vector<3x4x8xf32>
    %209 = tpu.concatenate %207, %208 in 0 : vector<1x4x8xf32>, vector<3x4x8xf32> -> vector<4x4x8xf32>
    %210 = arith.maximumf %204, %206 : vector<4x4x8xf32>
    %211 = arith.maximumf %210, %209 : vector<4x4x8xf32>
    %212 = vector.shape_cast %211 : vector<4x4x8xf32> to vector<4x32xf32>
    %c0_127 = arith.constant 0 : index
    %c3 = arith.constant 3 : index
    %c0_128 = arith.constant 0 : index
    %c0_129 = arith.constant 0 : index
    %213 = vector.load %arg5[%c0_127, %c3, %c0_128, %c0_129] : memref<1x4x4x32xf32, #tpu.memory_space<vmem>>, vector<1x1x4x32xf32>
    %214 = vector.shape_cast %213 : vector<1x1x4x32xf32> to vector<4x32xf32>
    %215 = vector.shape_cast %212 : vector<4x32xf32> to vector<1x1x4x32xf32>
    tpu.vector_store %arg5[%c0_127, %c3, %c0_128, %c0_129], %215 {strides = array<i32>} : memref<1x4x4x32xf32, #tpu.memory_space<vmem>>, vector<1x1x4x32xf32>,
    return
  }
  func.func @transform_0(%arg0: i32, %arg1: i32) -> (i32, i32, i32, i32) {
    %c0_i32 = arith.constant 0 : i32
    %c0_i32_0 = arith.constant 0 : i32
    %c0_i32_1 = arith.constant 0 : i32
    %c0_i32_2 = arith.constant 0 : i32
    return %arg0, %c0_i32, %c0_i32_0, %c0_i32_1 : i32, i32, i32, i32
  }
  func.func @transform_1(%arg0: i32, %arg1: i32) -> (i32, i32, i32) {
    %c0_i32 = arith.constant 0 : i32
    %c0_i32_0 = arith.constant 0 : i32
    %c0_i32_1 = arith.constant 0 : i32
    %c0_i32_2 = arith.constant 0 : i32
    return %c0_i32, %c0_i32_0, %c0_i32_1 : i32, i32, i32
  }
  func.func @transform_2(%arg0: i32, %arg1: i32) -> (i32, i32) {
    %c0_i32 = arith.constant 0 : i32
    %c0_i32_0 = arith.constant 0 : i32
    %c0_i32_1 = arith.constant 0 : i32
    return %c0_i32, %c0_i32_0 : i32, i32
  }
  func.func @transform_3(%arg0: i32, %arg1: i32) -> (i32, i32, i32, i32) {
    %c0_i32 = arith.constant 0 : i32
    %c0_i32_0 = arith.constant 0 : i32
    %c0_i32_1 = arith.constant 0 : i32
    return %arg0, %arg1, %c0_i32, %c0_i32_0 : i32, i32, i32, i32
  }
}

</mosaic_0001>

<llo_original>
// kernel: resnet_basic_stem_forward.1
$region0: #{resnet_basic_stem_forward.1}
  #allocation0 [shape = 'u32[]', space=smem, size = 0x4, offset = 0x4, fixed_abs, tag = 'smem constant byte address 0x4 - core index']
  #allocation1 [shape = 'u32[144,128]{1,0:T(1,128)}', space=vmem, size = 0x12000, scoped, tag = 'internal scratch']
  %s0 = inlined_call_operand.vmem [shape: bf16[2,6,64,27], index: 0, kind: input, shape index: {}]
  %s1 = inlined_call_operand.vmem [shape: bf16[3,27,8], index: 1, kind: input, shape index: {}]
  %s2 = inlined_call_operand.vmem [shape: f32[1,8], index: 2, kind: input, shape index: {}]
  %s3 = inlined_call_operand.vmem [shape: f32[2,4,4,32], index: 3, kind: output, shape index: {}]
  %s4 = sld [smem:[#allocation0]]
  $region45: #{resnet_basic_stem_forward.1} parent=0
    _
  %s6 = ssub.s32 1, %s4
  %s7 = scalar_select 0, %s6, %s4
  loop: start=0, step=1, limit=4
  $region2: #{resnet_basic_stem_forward.1} parent=0 // loop_pre_header
    _
  $region3: #{resnet_basic_stem_forward.1} parent=0 // loop_header
    %s9 = sphi 0, %s13
    %p10 = scmp.ge.s32.totalorder %s9, 4
    %s16 = sphi 0, %s28
    %s17 = sphi 0, %s24
    %s18 = sphi 0, %s16
    %s19 = sphi 0, %s17
    %s20 = sphi 0, %s18
    %s21 = sphi 0, %s19
    %s31 = sphi 0, %s33
    %s34 = sphi 0, %s31
    %s35 = sphi 0, %s34
    %s51 = sphi 0, %s35
    %s55 = sphi 0, %s55
    %s57 = sphi 0, %s55
    %s58 = sphi 0, %s57
    %s72 = sphi 0, %s58
    %s76 = sphi 0, %s76
    %s78 = sphi 0, %s76
    %s79 = sphi 0, %s78
    %s93 = sphi 0, %s79
    %s101 = sphi 0, %s103
    %s104 = sphi 0, %s101
    %s105 = sphi 0, %s104
    %s121 = sphi 0, %s105
  $region4: #{resnet_basic_stem_forward.1} parent=0 // loop_header_branch
    %12 = sbr.rel (%p10) target = $region8
  $region5: #{resnet_basic_stem_forward.1} parent=0 // loop_body
    %s14 = ssub.s32 %s9, 1
    %s15 = ssub.s32 %s9, 2
    %s22 = sadd.s32 1, %s17
    %p23 = scmp.ge.s32.totalorder %s22, 1
    %s24 = scalar_select %p23, 0, %s22
    %s25 = sadd.s32 1, %s16
    %s26 = scalar_select %p23, %s25, %s16
    %p27 = scmp.ge.s32.totalorder %s26, 2
    %s28 = scalar_select %p27, 0, %s26
    %s29 = ssub.s32 %s16, %s28
    %p30 = scmp.eq.s32.totalorder %s29, 0
    %s32 = sadd.s32 %s31, 1
    %s33 = scalar_select %p30, %s31, %s32
    %p36 = pneg %p30
    %p37 = scmp.eq.s32.totalorder %s9, 1
    %p38 = por %p36, %p37
    %p39 = scmp.ne.s32.totalorder %s31, %s34
    %p40 = scmp.eq.s32.totalorder %s9, 0
    %p41 = por %p39, %p40
    %p42 = scmp.ne.s32.totalorder %s31, %s34
    %p43 = scmp.eq.s32.totalorder %s14, 1
    %p44 = por %p42, %p43
    %p45 = scmp.ne.s32.totalorder %s34, %s35
    %p46 = scmp.eq.s32.totalorder %s14, 0
    %p47 = por %p45, %p46
    %p48 = scmp.ne.s32.totalorder %s34, %s35
    %p49 = scmp.eq.s32.totalorder %s15, 1
    %p50 = por %p48, %p49
    %p52 = scmp.ne.s32.totalorder %s35, %s51
    %p53 = scmp.eq.s32.totalorder %s15, 0
    %p54 = por %p52, %p53
    %s56 = sadd.s32 %s55, 1
    %p59 = scmp.eq.s32.totalorder %s9, 1
    %p60 = scmp.ne.s32.totalorder %s55, %s57
    %p61 = scmp.eq.s32.totalorder %s9, 0
    %p62 = por %p60, %p61
    %p63 = scmp.ne.s32.totalorder %s55, %s57
    %p64 = scmp.eq.s32.totalorder %s14, 1
    %p65 = por %p63, %p64
    %p66 = scmp.ne.s32.totalorder %s57, %s58
    %p67 = scmp.eq.s32.totalorder %s14, 0
    %p68 = por %p66, %p67
    %p69 = scmp.ne.s32.totalorder %s57, %s58
    %p70 = scmp.eq.s32.totalorder %s15, 1
    %p71 = por %p69, %p70
    %p73 = scmp.ne.s32.totalorder %s58, %s72
    %p74 = scmp.eq.s32.totalorder %s15, 0
    %p75 = por %p73, %p74
    %s77 = sadd.s32 %s76, 1
    %p80 = scmp.eq.s32.totalorder %s9, 1
    %p81 = scmp.ne.s32.totalorder %s76, %s78
    %p82 = scmp.eq.s32.totalorder %s9, 0
    %p83 = por %p81, %p82
    %p84 = scmp.ne.s32.totalorder %s76, %s78
    %p85 = scmp.eq.s32.totalorder %s14, 1
    %p86 = por %p84, %p85
    %p87 = scmp.ne.s32.totalorder %s78, %s79
    %p88 = scmp.eq.s32.totalorder %s14, 0
    %p89 = por %p87, %p88
    %p90 = scmp.ne.s32.totalorder %s78, %s79
    %p91 = scmp.eq.s32.totalorder %s15, 1
    %p92 = por %p90, %p91
    %p94 = scmp.ne.s32.totalorder %s79, %s93
    %p95 = scmp.eq.s32.totalorder %s15, 0
    %p96 = por %p94, %p95
    %s97 = ssub.s32 %s16, %s28
    %s98 = ssub.s32 %s17, %s24
    %s99 = sor.u32 %s97, %s98
    %p100 = scmp.eq.s32.totalorder %s99, 0
    %s102 = sadd.s32 %s101, 1
    %s103 = scalar_select %p100, %s101, %s102
    %p106 = pneg %p100
    %p107 = scmp.eq.s32.totalorder %s9, 1
    %p108 = por %p106, %p107
    %p109 = scmp.ne.s32.totalorder %s101, %s104
    %p110 = scmp.eq.s32.totalorder %s9, 0
    %p111 = por %p109, %p110
    %p112 = scmp.ne.s32.totalorder %s101, %s104
    %p113 = scmp.eq.s32.totalorder %s14, 1
    %p114 = por %p112, %p113
    %p115 = scmp.ne.s32.totalorder %s104, %s105
    %p116 = scmp.eq.s32.totalorder %s14, 0
    %p117 = por %p115, %p116
    %p118 = scmp.ne.s32.totalorder %s104, %s105
    %p119 = scmp.eq.s32.totalorder %s15, 1
    %p120 = por %p118, %p119
    %p122 = scmp.ne.s32.totalorder %s105, %s121
    %p123 = scmp.eq.s32.totalorder %s15, 0
    %p124 = por %p122, %p123
    %p125 = scmp.le.s32.totalorder 1, %s9
    %p126 = scmp.lt.s32.totalorder %s9, 3
    %p127 = pnand %p125, %p126
    %p128 = pneg %p127
    // Predicated region
    $region9: #{resnet_basic_stem_forward.1} parent=5 // pred_check
      _
    $region10: #{resnet_basic_stem_forward.1} parent=5 // pred_check_branch
      %130 = sbr.rel (%p127) target = $region12
    $region11: #{resnet_basic_stem_forward.1} parent=5 // pred_region
      %s131 = ssub.s32 %s9, 1
      // Predicated region
      $region13: #{resnet_basic_stem_forward.1} parent=11 // pred_check
        %p132 = pneg %p68
      $region14: #{resnet_basic_stem_forward.1} parent=11 // pred_check_branch
        %134 = sbr.rel (%p132) target = $region16
      $region15: #{resnet_basic_stem_forward.1} parent=11 // pred_region
        _
      $region16: #{resnet_basic_stem_forward.1} parent=11 // pred_fallthru
        _
      // Predicated region
      $region17: #{resnet_basic_stem_forward.1} parent=11 // pred_check
        %p135 = pneg %p89
      $region18: #{resnet_basic_stem_forward.1} parent=11 // pred_check_branch
        %137 = sbr.rel (%p135) target = $region20
      $region19: #{resnet_basic_stem_forward.1} parent=11 // pred_region
        _
      $region20: #{resnet_basic_stem_forward.1} parent=11 // pred_fallthru
        _
    $region12: #{resnet_basic_stem_forward.1} parent=5 // pred_fallthru
      _
    %p138 = scmp.lt.s32.totalorder %s9, 2
    // Predicated region
    $region21: #{resnet_basic_stem_forward.1} parent=5 // pred_check
      %p139 = pneg %p138
    $region22: #{resnet_basic_stem_forward.1} parent=5 // pred_check_branch
      %141 = sbr.rel (%p139) target = $region24
    $region23: #{resnet_basic_stem_forward.1} parent=5 // pred_region
      // Predicated region
      $region25: #{resnet_basic_stem_forward.1} parent=23 // pred_check
        %p142 = pneg %p41
      $region26: #{resnet_basic_stem_forward.1} parent=23 // pred_check_branch
        %144 = sbr.rel (%p142) target = $region28
      $region27: #{resnet_basic_stem_forward.1} parent=23 // pred_region
        %p145 = scmp.lt.s32.totalorder %s16, 1
        %s146 = scalar_select %p145, %s16, 1
        %s147 = smul.addr %s146, 48
        %s148 = smul.addr %s147, 4
        %s149 = scalar_lea.vmem %s0, %s148
      $region28: #{resnet_basic_stem_forward.1} parent=23 // pred_fallthru
        _
    $region24: #{resnet_basic_stem_forward.1} parent=5 // pred_fallthru
      _
    %p150 = scmp.le.s32.totalorder 1, %s9
    %p151 = scmp.lt.s32.totalorder %s9, 3
    %p152 = pnand %p150, %p151
    %p153 = pneg %p152
    // Predicated region
    $region29: #{resnet_basic_stem_forward.1} parent=5 // pred_check
      _
    $region30: #{resnet_basic_stem_forward.1} parent=5 // pred_check_branch
      %155 = sbr.rel (%p152) target = $region32
    $region31: #{resnet_basic_stem_forward.1} parent=5 // pred_region
      %s156 = ssub.s32 %s9, 1
      %p157 = scmp.lt.s32.totalorder %s18, 1
      %s158 = scalar_select %p157, %s18, 1
      %s159 = smul.addr %s158, 48
      %s160 = smul.addr %s159, 4
      %s161 = scalar_lea.vmem %s0, %s160
      %p162 = pneg %p47
      %p163 = pneg %p44
      %p164 = pneg %p68
      %p165 = pneg %p65
      %p166 = pneg %p89
      %p167 = pneg %p86
      %p168 = pneg %p117
      %p169 = pneg %p114
      %s170 = smul.u32 4, %s19
      %p171 = scmp.lt.s32.totalorder %s18, 1
      %s172 = scalar_select %p171, %s18, 1
      %p173 = scmp.lt.s32.totalorder %s170, 3
      %s174 = scalar_select %p173, %s170, 3
      %s175 = smul.addr %s172, 4
      %s176 = sadd.s32 %s174, %s175
      %s177 = smul.addr %s176, 4
      %s178 = scalar_lea.vmem %s3, %s177
      %p179 = scmp.lt.s32.totalorder %s18, 1
      %s180 = scalar_select %p179, %s18, 1
      %s181 = smul.addr %s180, 48
      %s182 = smul.addr %s181, 4
      %s183 = scalar_lea.vmem %s0, %s182
      %s184 = smul.u32 4, %s19
      %p185 = scmp.lt.s32.totalorder %s18, 1
      %s186 = scalar_select %p185, %s18, 1
      %p187 = scmp.lt.s32.totalorder %s184, 3
      %s188 = scalar_select %p187, %s184, 3
      %s189 = smul.addr %s186, 4
      %s190 = sadd.s32 %s188, %s189
      %s191 = smul.addr %s190, 4
      %s192 = scalar_lea.vmem %s3, %s191
      %s193 = smul.u32 4, %s19
      %s195 = smul.u32 %s19, 4
      %s196 = smul.u32 %s195, 8
      %s197 = smul.addr %s196, 4
      %s198 = scalar_lea.vmem %s183, %s197
      %v199 = vld [vmem:[%s198] sm:$0xf]
      %v200 = vld [vmem:[%s198 + $0x4] sm:$0xf]
      %v201 = vld [vmem:[%s198 + $0x8] sm:$0xf]
      %v202 = vld [vmem:[%s198 + $0xc] sm:$0xf]
      %v203 = vld [vmem:[%s198 + $0x10] sm:$0xf]
      %v204 = vld [vmem:[%s198 + $0x14] sm:$0xf]
      %v205 = vld [vmem:[%s198 + $0x18] sm:$0xf]
      %v206 = vld [vmem:[%s198 + $0x1c] sm:$0xf]
      %v207 = vld [vmem:[%s1] sm:$0xf]
      %v208 = vld [vmem:[%s1 + $0x4] sm:$0xf]
      %v209 = vld [vmem:[%s1 + $0x8] sm:$0xf]
      %v210 = vld [vmem:[%s1 + $0xc] sm:$0x3]
      %s211 = sadd.s32 %s195, 1
      %s212 = smul.u32 %s211, 8
      %s213 = smul.addr %s212, 4
      %s214 = scalar_lea.vmem %s183, %s213
      %v215 = vld [vmem:[%s214] sm:$0xf]
      %v216 = vld [vmem:[%s214 + $0x4] sm:$0xf]
      %v217 = vld [vmem:[%s214 + $0x8] sm:$0xf]
      %v218 = vld [vmem:[%s214 + $0xc] sm:$0xf]
      %v219 = vld [vmem:[%s214 + $0x10] sm:$0xf]
      %v220 = vld [vmem:[%s214 + $0x14] sm:$0xf]
      %v221 = vld [vmem:[%s214 + $0x18] sm:$0xf]
      %v222 = vld [vmem:[%s214 + $0x1c] sm:$0xf]
      %s223 = scalar_lea.vmem %s1, 16
      %v224 = vld [vmem:[%s223] sm:$0xf]
      %v225 = vld [vmem:[%s223 + $0x4] sm:$0xf]
      %v226 = vld [vmem:[%s223 + $0x8] sm:$0xf]
      %v227 = vld [vmem:[%s223 + $0xc] sm:$0x3]
      %v236 = vunpack.c.l.b16 %v215
      %v237 = vunpack.c.l.b16 %v216
      %v238 = vunpack.c.l.b16 %v217
      %v239 = vunpack.c.l.b16 %v218
      %v240 = vunpack.c.l.b16 %v219
      %v241 = vunpack.c.l.b16 %v220
      %v242 = vunpack.c.l.b16 %v221
      %v243 = vunpack.c.l.b16 %v222
      %v244 = vpack.c.b16 %v237, %v236
      %v245 = vpack.c.b16 %v239, %v238
      %v246 = vpack.c.b16 %v241, %v240
      %v247 = vpack.c.b16 %v243, %v242
      %v252 = vunpack.c.l.b16 %v224
      %v253 = vunpack.c.l.b16 %v225
      %v254 = vunpack.c.l.b16 %v226
      %v255 = vunpack.c.l.b16 %v227
      %v256 = vpack.c.b16 %v253, %v252
      %v257 = vpack.c.b16 %v255, %v254
      %vm259 = vcmask 220160
      %v261 = vsel %vm259, %v244, 0
      %v264 = vsel %vm259, %v245, 0
      %v267 = vsel %vm259, %v246, 0
      %v270 = vsel %vm259, %v247, 0
      %vm272 = vcmask 1044480
      %vm273 = vcmask 1045504
      %v274 = vsel %vm272, 4294967295, 65535
      %v275 = vsel %vm273, %v274, 0
      %v277 = vand.u32 %v257, %v275
      %279 = vmatprep.subr.bf16.mxu0 0
      %280 = vmatpush1.bf16.msra.mxu0 %v256
      %281 = vmatprep.subr.bf16.mxu0 0
      %282 = vmatpush1.bf16.msra.mxu0 %v277
      %283 = vmatprep.subr.bf16.mxu0 0
      %284 = vmatpush1.bf16.msra.mxu0 0
      %285 = vmatprep.subr.bf16.mxu0 0
      %286 = vmatpush1.bf16.msra.mxu0 0
      %287 = vmatprep.subr.bf16.mxu0 0
      %288 = vmatpush1.bf16.msra.mxu0 0
      %289 = vmatprep.subr.bf16.mxu0 0
      %290 = vmatpush1.bf16.msra.mxu0 0
      %291 = vmatprep.subr.bf16.mxu0 0
      %292 = vmatpush1.bf16.msra.mxu0 0
      %293 = vmatprep.subr.bf16.mxu0 0
      %294 = vmatpush1.bf16.msra.mxu0 0
      %295 = vmatprep.subr.bf16.mxu0 0
      %296 = vmatpush1.bf16.msra.mxu0 0
      %297 = vmatprep.subr.bf16.mxu0 0
      %298 = vmatpush1.bf16.msra.mxu0 0
      %299 = vmatprep.subr.bf16.mxu0 0
      %300 = vmatpush1.bf16.msra.mxu0 0
      %301 = vmatprep.subr.bf16.mxu0 0
      %302 = vmatpush1.bf16.msra.mxu0 0
      %303 = vmatprep.subr.bf16.mxu0 0
      %304 = vmatpush1.bf16.msra.mxu0 0
      %305 = vmatprep.subr.bf16.mxu0 0
      %306 = vmatpush1.bf16.msra.mxu0 0
      %307 = vmatprep.subr.bf16.mxu0 0
      %308 = vmatpush1.bf16.msra.mxu0 0
      %309 = vmatprep.subr.bf16.mxu0 0
      %310 = vmatpush1.bf16.msra.mxu0 0
      %311 = vmatprep.mubr.bf16.mxu0 0
      %312 = vmatmul.mubr.bf16.gmra.mrb[0].mxu0 %v261
      %v313 = vpop.f32.mrb[0].mxu0
      %v314 = vadd.f32 0.0, %v313
      %v315 = vpop.f32.mrb[0].mxu0
      %v316 = vpop.f32.mrb[0].mxu0
      %v317 = vadd.f32 0.0, %v316
      %v318 = vpop.f32.mrb[0].mxu0
      %319 = vmatprep.mubr.bf16.mxu0 0
      %320 = vmatmul.mubr.bf16.gmra.mrb[0].mxu0 %v264
      %v321 = vpop.f32.mrb[0].mxu0
      %v322 = vadd.f32 0.0, %v321
      %v323 = vpop.f32.mrb[0].mxu0
      %v324 = vpop.f32.mrb[0].mxu0
      %v325 = vadd.f32 0.0, %v324
      %v326 = vpop.f32.mrb[0].mxu0
      %327 = vmatprep.mubr.bf16.mxu0 0
      %328 = vmatmul.mubr.bf16.gmra.mrb[0].mxu0 %v267
      %v329 = vpop.f32.mrb[0].mxu0
      %v330 = vadd.f32 0.0, %v329
      %v331 = vpop.f32.mrb[0].mxu0
      %v332 = vpop.f32.mrb[0].mxu0
      %v333 = vadd.f32 0.0, %v332
      %v334 = vpop.f32.mrb[0].mxu0
      %335 = vmatprep.mubr.bf16.mxu0 0
      %336 = vmatmul.mubr.bf16.gmra.mrb[0].mxu0 %v270
      %v337 = vpop.f32.mrb[0].mxu0
      %v338 = vadd.f32 0.0, %v337
      %v339 = vpop.f32.mrb[0].mxu0
      %v340 = vpop.f32.mrb[0].mxu0
      %v341 = vadd.f32 0.0, %v340
      %v342 = vpop.f32.mrb[0].mxu0
      %343 = vdwg.mxu0
      %v352 = vunpack.c.l.b16 %v199
      %v353 = vunpack.c.l.b16 %v200
      %v354 = vunpack.c.l.b16 %v201
      %v355 = vunpack.c.l.b16 %v202
      %v356 = vunpack.c.l.b16 %v203
      %v357 = vunpack.c.l.b16 %v204
      %v358 = vunpack.c.l.b16 %v205
      %v359 = vunpack.c.l.b16 %v206
      %v360 = vpack.c.b16 %v353, %v352
      %v361 = vpack.c.b16 %v355, %v354
      %v362 = vpack.c.b16 %v357, %v356
      %v363 = vpack.c.b16 %v359, %v358
      %v368 = vunpack.c.l.b16 %v207
      %v369 = vunpack.c.l.b16 %v208
      %v370 = vunpack.c.l.b16 %v209
      %v371 = vunpack.c.l.b16 %v210
      %v372 = vpack.c.b16 %v369, %v368
      %v373 = vpack.c.b16 %v371, %v370
      %v376 = vsel %vm259, %v360, 0
      %v379 = vsel %vm259, %v361, 0
      %v382 = vsel %vm259, %v362, 0
      %v385 = vsel %vm259, %v363, 0
      %v388 = vand.u32 %v373, %v275
      %390 = vmatprep.subr.bf16.mxu0 0
      %391 = vmatpush1.bf16.msra.mxu0 %v372
      %392 = vmatprep.subr.bf16.mxu0 0
      %393 = vmatpush1.bf16.msra.mxu0 %v388
      %394 = vmatprep.subr.bf16.mxu0 0
      %395 = vmatpush1.bf16.msra.mxu0 0
      %396 = vmatprep.subr.bf16.mxu0 0
      %397 = vmatpush1.bf16.msra.mxu0 0
      %398 = vmatprep.subr.bf16.mxu0 0
      %399 = vmatpush1.bf16.msra.mxu0 0
      %400 = vmatprep.subr.bf16.mxu0 0
      %401 = vmatpush1.bf16.msra.mxu0 0
      %402 = vmatprep.subr.bf16.mxu0 0
      %403 = vmatpush1.bf16.msra.mxu0 0
      %404 = vmatprep.subr.bf16.mxu0 0
      %405 = vmatpush1.bf16.msra.mxu0 0
      %406 = vmatprep.subr.bf16.mxu0 0
      %407 = vmatpush1.bf16.msra.mxu0 0
      %408 = vmatprep.subr.bf16.mxu0 0
      %409 = vmatpush1.bf16.msra.mxu0 0
      %410 = vmatprep.subr.bf16.mxu0 0
      %411 = vmatpush1.bf16.msra.mxu0 0
      %412 = vmatprep.subr.bf16.mxu0 0
      %413 = vmatpush1.bf16.msra.mxu0 0
      %414 = vmatprep.subr.bf16.mxu0 0
      %415 = vmatpush1.bf16.msra.mxu0 0
      %416 = vmatprep.subr.bf16.mxu0 0
      %417 = vmatpush1.bf16.msra.mxu0 0
      %418 = vmatprep.subr.bf16.mxu0 0
      %419 = vmatpush1.bf16.msra.mxu0 0
      %420 = vmatprep.subr.bf16.mxu0 0
      %421 = vmatpush1.bf16.msra.mxu0 0
      %422 = vmatprep.mubr.bf16.mxu0 0
      %423 = vmatmul.mubr.bf16.gmra.mrb[0].mxu0 %v376
      %v424 = vpop.f32.mrb[0].mxu0
      %v425 = vadd.f32 %v314, %v424
      %v426 = vpop.f32.mrb[0].mxu0
      %v427 = vpop.f32.mrb[0].mxu0
      %v428 = vadd.f32 %v317, %v427
      %v429 = vpop.f32.mrb[0].mxu0
      %430 = vmatprep.mubr.bf16.mxu0 0
      %431 = vmatmul.mubr.bf16.gmra.mrb[0].mxu0 %v379
      %v432 = vpop.f32.mrb[0].mxu0
      %v433 = vadd.f32 %v322, %v432
      %v434 = vpop.f32.mrb[0].mxu0
      %v435 = vpop.f32.mrb[0].mxu0
      %v436 = vadd.f32 %v325, %v435
      %v437 = vpop.f32.mrb[0].mxu0
      %438 = vmatprep.mubr.bf16.mxu0 0
      %439 = vmatmul.mubr.bf16.gmra.mrb[0].mxu0 %v382
      %v440 = vpop.f32.mrb[0].mxu0
      %v441 = vadd.f32 %v330, %v440
      %v442 = vpop.f32.mrb[0].mxu0
      %v443 = vpop.f32.mrb[0].mxu0
      %v444 = vadd.f32 %v333, %v443
      %v445 = vpop.f32.mrb[0].mxu0
      %446 = vmatprep.mubr.bf16.mxu0 0
      %447 = vmatmul.mubr.bf16.gmra.mrb[0].mxu0 %v385
      %v448 = vpop.f32.mrb[0].mxu0
      %v449 = vadd.f32 %v338, %v448
      %v450 = vpop.f32.mrb[0].mxu0
      %v451 = vpop.f32.mrb[0].mxu0
      %v452 = vadd.f32 %v341, %v451
      %v453 = vpop.f32.mrb[0].mxu0
      %454 = vdwg.mxu0
      %s455 = sadd.s32 %s195, 2
      %s456 = smul.u32 %s455, 8
      %s457 = smul.addr %s456, 4
      %s458 = scalar_lea.vmem %s183, %s457
      %v459 = vld [vmem:[%s458] sm:$0xf]
      %v460 = vld [vmem:[%s458 + $0x4] sm:$0xf]
      %v461 = vld [vmem:[%s458 + $0x8] sm:$0xf]
      %v462 = vld [vmem:[%s458 + $0xc] sm:$0xf]
      %v463 = vld [vmem:[%s458 + $0x10] sm:$0xf]
      %v464 = vld [vmem:[%s458 + $0x14] sm:$0xf]
      %v465 = vld [vmem:[%s458 + $0x18] sm:$0xf]
      %v466 = vld [vmem:[%s458 + $0x1c] sm:$0xf]
      %s467 = scalar_lea.vmem %s1, 32
      %v468 = vld [vmem:[%s467] sm:$0xf]
      %v469 = vld [vmem:[%s467 + $0x4] sm:$0xf]
      %v470 = vld [vmem:[%s467 + $0x8] sm:$0xf]
      %v471 = vld [vmem:[%s467 + $0xc] sm:$0x3]
      %v480 = vunpack.c.l.b16 %v459
      %v481 = vunpack.c.l.b16 %v460
      %v482 = vunpack.c.l.b16 %v461
      %v483 = vunpack.c.l.b16 %v462
      %v484 = vunpack.c.l.b16 %v463
      %v485 = vunpack.c.l.b16 %v464
      %v486 = vunpack.c.l.b16 %v465
      %v487 = vunpack.c.l.b16 %v466
      %v488 = vpack.c.b16 %v481, %v480
      %v489 = vpack.c.b16 %v483, %v482
      %v490 = vpack.c.b16 %v485, %v484
      %v491 = vpack.c.b16 %v487, %v486
      %v496 = vunpack.c.l.b16 %v468
      %v497 = vunpack.c.l.b16 %v469
      %v498 = vunpack.c.l.b16 %v470
      %v499 = vunpack.c.l.b16 %v471
      %v500 = vpack.c.b16 %v497, %v496
      %v501 = vpack.c.b16 %v499, %v498
      %v504 = vsel %vm259, %v488, 0
      %v507 = vsel %vm259, %v489, 0
      %v510 = vsel %vm259, %v490, 0
      %v513 = vsel %vm259, %v491, 0
      %v516 = vand.u32 %v501, %v275
      %518 = vmatprep.subr.bf16.mxu0 0
      %519 = vmatpush1.bf16.msra.mxu0 %v500
      %520 = vmatprep.subr.bf16.mxu0 0
      %521 = vmatpush1.bf16.msra.mxu0 %v516
      %522 = vmatprep.subr.bf16.mxu0 0
      %523 = vmatpush1.bf16.msra.mxu0 0
      %524 = vmatprep.subr.bf16.mxu0 0
      %525 = vmatpush1.bf16.msra.mxu0 0
      %526 = vmatprep.subr.bf16.mxu0 0
      %527 = vmatpush1.bf16.msra.mxu0 0
      %528 = vmatprep.subr.bf16.mxu0 0
      %529 = vmatpush1.bf16.msra.mxu0 0
      %530 = vmatprep.subr.bf16.mxu0 0
      %531 = vmatpush1.bf16.msra.mxu0 0
      %532 = vmatprep.subr.bf16.mxu0 0
      %533 = vmatpush1.bf16.msra.mxu0 0
      %534 = vmatprep.subr.bf16.mxu0 0
      %535 = vmatpush1.bf16.msra.mxu0 0
      %536 = vmatprep.subr.bf16.mxu0 0
      %537 = vmatpush1.bf16.msra.mxu0 0
      %538 = vmatprep.subr.bf16.mxu0 0
      %539 = vmatpush1.bf16.msra.mxu0 0
      %540 = vmatprep.subr.bf16.mxu0 0
      %541 = vmatpush1.bf16.msra.mxu0 0
      %542 = vmatprep.subr.bf16.mxu0 0
      %543 = vmatpush1.bf16.msra.mxu0 0
      %544 = vmatprep.subr.bf16.mxu0 0
      %545 = vmatpush1.bf16.msra.mxu0 0
      %546 = vmatprep.subr.bf16.mxu0 0
      %547 = vmatpush1.bf16.msra.mxu0 0
      %548 = vmatprep.subr.bf16.mxu0 0
      %549 = vmatpush1.bf16.msra.mxu0 0
      %550 = vmatprep.mubr.bf16.mxu0 0
      %551 = vmatmul.mubr.bf16.gmra.mrb[0].mxu0 %v504
      %v552 = vpop.f32.mrb[0].mxu0
      %v553 = vadd.f32 0.0, %v552
      %v554 = vpop.f32.mrb[0].mxu0
      %v555 = vpop.f32.mrb[0].mxu0
      %v556 = vadd.f32 0.0, %v555
      %v557 = vpop.f32.mrb[0].mxu0
      %558 = vmatprep.mubr.bf16.mxu0 0
      %559 = vmatmul.mubr.bf16.gmra.mrb[0].mxu0 %v507
      %v560 = vpop.f32.mrb[0].mxu0
      %v561 = vadd.f32 0.0, %v560
      %v562 = vpop.f32.mrb[0].mxu0
      %v563 = vpop.f32.mrb[0].mxu0
      %v564 = vadd.f32 0.0, %v563
      %v565 = vpop.f32.mrb[0].mxu0
      %566 = vmatprep.mubr.bf16.mxu0 0
      %567 = vmatmul.mubr.bf16.gmra.mrb[0].mxu0 %v510
      %v568 = vpop.f32.mrb[0].mxu0
      %v569 = vadd.f32 0.0, %v568
      %v570 = vpop.f32.mrb[0].mxu0
      %v571 = vpop.f32.mrb[0].mxu0
      %v572 = vadd.f32 0.0, %v571
      %v573 = vpop.f32.mrb[0].mxu0
      %574 = vmatprep.mubr.bf16.mxu0 0
      %575 = vmatmul.mubr.bf16.gmra.mrb[0].mxu0 %v513
      %v576 = vpop.f32.mrb[0].mxu0
      %v577 = vadd.f32 0.0, %v576
      %v578 = vpop.f32.mrb[0].mxu0
      %v579 = vpop.f32.mrb[0].mxu0
      %v580 = vadd.f32 0.0, %v579
      %v581 = vpop.f32.mrb[0].mxu0
      %582 = vdwg.mxu0
      %v583 = vadd.f32 %v425, %v553
      %v584 = vadd.f32 %v428, %v556
      %v585 = vadd.f32 %v433, %v561
      %v586 = vadd.f32 %v436, %v564
      %v587 = vadd.f32 %v441, %v569
      %v588 = vadd.f32 %v444, %v572
      %v589 = vadd.f32 %v449, %v577
      %v590 = vadd.f32 %v452, %v580
      %v591 = vld [vmem:[%s2] sm:$0x1]
      %v593 = vlaneseq
      %v594 = vshrl.u32 %v593, 7
      %v595 = vsub.s32 0, %v594
      %v596 = vrot.slane %v591, %v595
      %v598 = vadd.f32 %v583, %v596
      %v599 = vadd.f32 %v584, %v596
      %v600 = vadd.f32 %v585, %v596
      %v601 = vadd.f32 %v586, %v596
      %v602 = vadd.f32 %v587, %v596
      %v603 = vadd.f32 %v588, %v596
      %v604 = vadd.f32 %v589, %v596
      %v605 = vadd.f32 %v590, %v596
      %v606 = vmax.f32 %v598, 0.0
      %v607 = vmax.f32 %v599, 0.0
      %v608 = vmax.f32 %v600, 0.0
      %v609 = vmax.f32 %v601, 0.0
      %v610 = vmax.f32 %v602, 0.0
      %v611 = vmax.f32 %v603, 0.0
      %v612 = vmax.f32 %v604, 0.0
      %v613 = vmax.f32 %v605, 0.0
      %v622 = vcombine.high %v606, %v606
      %v623 = vcombine.high %v607, %v607
      %v624 = vcombine.high %v608, %v608
      %v625 = vcombine.high %v609, %v609
      %v626 = vcombine.high %v610, %v610
      %v627 = vcombine.high %v611, %v611
      %v628 = vcombine.high %v612, %v612
      %v629 = vcombine.high %v613, %v613
      %v638 = vrot.slane %v622, 7
      %v639 = vrot.slane %v623, 7
      %v640 = vrot.slane %v624, 7
      %v641 = vrot.slane %v625, 7
      %v642 = vrot.slane %v626, 7
      %v643 = vrot.slane %v627, 7
      %v644 = vrot.slane %v628, 7
      %v645 = vrot.slane %v629, 7
      %vm654 = vcmask 1040384
      %v655 = vsel %vm654, 0.0, %v638
      %v656 = vsel %vm654, 0.0, %v639
      %v657 = vsel %vm654, 0.0, %v640
      %v658 = vsel %vm654, 0.0, %v641
      %v659 = vsel %vm654, 0.0, %v642
      %v660 = vsel %vm654, 0.0, %v643
      %v661 = vsel %vm654, 0.0, %v644
      %v662 = vsel %vm654, 0.0, %v645
      %v663 = vmax.f32 %v606, %v622
      %v664 = vmax.f32 %v607, %v623
      %v665 = vmax.f32 %v608, %v624
      %v666 = vmax.f32 %v609, %v625
      %v667 = vmax.f32 %v610, %v626
      %v668 = vmax.f32 %v611, %v627
      %v669 = vmax.f32 %v612, %v628
      %v670 = vmax.f32 %v613, %v629
      %v671 = vmax.f32 %v663, %v655
      %v672 = vmax.f32 %v664, %v656
      %v673 = vmax.f32 %v665, %v657
      %v674 = vmax.f32 %v666, %v658
      %v675 = vmax.f32 %v667, %v659
      %v676 = vmax.f32 %v668, %v660
      %v677 = vmax.f32 %v669, %v661
      %v678 = vmax.f32 %v670, %v662
      %v679 = vmax.f32 %v671, %v672
      %v680 = vmax.f32 %v673, %v674
      %v681 = vmax.f32 %v675, %v676
      %v682 = vmax.f32 %v677, %v678
      %v683 = vmax.f32 %v679, 0.0
      %v684 = vmax.f32 %v680, %v672
      %v685 = vmax.f32 %v681, %v674
      %v686 = vmax.f32 %v682, %v676
      %v687 = vcombine.low %v683, %v685
      %v689 = vunpack.c.l.s4 1983009808
      %v690 = vunpack.c.0.s8 %v689
      %v691 = vlaneseq
      %v692 = vshrl.u32 %v691, 7
      %v693 = vsub.s32 %v690, %v692
      %v694 = vrot.slane %v687, %v693
      %v695 = vcombine.low %v684, %v686
      %v697 = vunpack.c.l.s4 1983009808
      %v698 = vunpack.c.0.s8 %v697
      %v699 = vlaneseq
      %v700 = vshrl.u32 %v699, 7
      %v701 = vsub.s32 %v698, %v700
      %v702 = vrot.slane %v695, %v701
      %v703 = vcombine.low %v694, %v702
      %v704 = vcombine.high %v694, %v702
      %v706 = vunpack.c.l.s4 1934713408
      %v707 = vunpack.c.0.s8 %v706
      %v708 = vlaneseq
      %v709 = vshrl.u32 %v708, 7
      %v710 = vsub.s32 %v707, %v709
      %v711 = vrot.slane %v703, %v710
      %v713 = vunpack.c.l.s4 1934713408
      %v714 = vunpack.c.0.s8 %v713
      %v715 = vlaneseq
      %v716 = vshrl.u32 %v715, 7
      %v717 = vsub.s32 %v714, %v716
      %v718 = vrot.slane %v704, %v717
      %v719 = vcombine.high %v711, 0.0
      %v720 = vcombine.high %v718, 0.0
      %722 = vrot.lane.b32.xlu0 %v719, 8
      %v723 = vpop.permute.xlu0 %722
      %726 = vrot.lane.b32.xlu0 %v718, 16
      %v727 = vpop.permute.xlu0 %726
      %730 = vrot.lane.b32.xlu0 %v720, 24
      %v731 = vpop.permute.xlu0 %730
      %vm733 = vcmask 64512
      %v734 = vsel %vm733, %v711, %v723
      %vm735 = vcmask 130048
      %v736 = vsel %vm735, %v734, %v727
      %vm737 = vcmask 195584
      %v738 = vsel %vm737, %v736, %v731
      %vm739 = vcmask 257024
      %740 = vst.msk [vmem:[%s192] sm:$0xf] %vm739, %v738
      %v741 = vld [vmem:[%s214] sm:$0xf]
      %v742 = vld [vmem:[%s214 + $0x4] sm:$0xf]
      %v743 = vld [vmem:[%s214 + $0x8] sm:$0xf]
      %v744 = vld [vmem:[%s214 + $0xc] sm:$0xf]
      %v745 = vld [vmem:[%s214 + $0x10] sm:$0xf]
      %v746 = vld [vmem:[%s214 + $0x14] sm:$0xf]
      %v747 = vld [vmem:[%s214 + $0x18] sm:$0xf]
      %v748 = vld [vmem:[%s214 + $0x1c] sm:$0xf]
      %v749 = vld [vmem:[%s1] sm:$0xf]
      %v750 = vld [vmem:[%s1 + $0x4] sm:$0xf]
      %v751 = vld [vmem:[%s1 + $0x8] sm:$0xf]
      %v752 = vld [vmem:[%s1 + $0xc] sm:$0x3]
      %v753 = vld [vmem:[%s458] sm:$0xf]
      %v754 = vld [vmem:[%s458 + $0x4] sm:$0xf]
      %v755 = vld [vmem:[%s458 + $0x8] sm:$0xf]
      %v756 = vld [vmem:[%s458 + $0xc] sm:$0xf]
      %v757 = vld [vmem:[%s458 + $0x10] sm:$0xf]
      %v758 = vld [vmem:[%s458 + $0x14] sm:$0xf]
      %v759 = vld [vmem:[%s458 + $0x18] sm:$0xf]
      %v760 = vld [vmem:[%s458 + $0x1c] sm:$0xf]
      %v761 = vld [vmem:[%s223] sm:$0xf]
      %v762 = vld [vmem:[%s223 + $0x4] sm:$0xf]
      %v763 = vld [vmem:[%s223 + $0x8] sm:$0xf]
      %v764 = vld [vmem:[%s223 + $0xc] sm:$0x3]
      %v773 = vunpack.c.l.b16 %v753
      %v774 = vunpack.c.l.b16 %v754
      %v775 = vunpack.c.l.b16 %v755
      %v776 = vunpack.c.l.b16 %v756
      %v777 = vunpack.c.l.b16 %v757
      %v778 = vunpack.c.l.b16 %v758
      %v779 = vunpack.c.l.b16 %v759
      %v780 = vunpack.c.l.b16 %v760
      %v781 = vpack.c.b16 %v774, %v773
      %v782 = vpack.c.b16 %v776, %v775
      %v783 = vpack.c.b16 %v778, %v777
      %v784 = vpack.c.b16 %v780, %v779
      %v789 = vunpack.c.l.b16 %v761
      %v790 = vunpack.c.l.b16 %v762
      %v791 = vunpack.c.l.b16 %v763
      %v792 = vunpack.c.l.b16 %v764
      %v793 = vpack.c.b16 %v790, %v789
      %v794 = vpack.c.b16 %v792, %v791
      %v797 = vsel %vm259, %v781, 0
      %v800 = vsel %vm259, %v782, 0
      %v803 = vsel %vm259, %v783, 0
      %v806 = vsel %vm259, %v784, 0
      %v809 = vand.u32 %v794, %v275
      %811 = vmatprep.subr.bf16.mxu0 0
      %812 = vmatpush1.bf16.msra.mxu0 %v793
      %813 = vmatprep.subr.bf16.mxu0 0
      %814 = vmatpush1.bf16.msra.mxu0 %v809
      %815 = vmatprep.subr.bf16.mxu0 0
      %816 = vmatpush1.bf16.msra.mxu0 0
      %817 = vmatprep.subr.bf16.mxu0 0
      %818 = vmatpush1.bf16.msra.mxu0 0
      %819 = vmatprep.subr.bf16.mxu0 0
      %820 = vmatpush1.bf16.msra.mxu0 0
      %821 = vmatprep.subr.bf16.mxu0 0
      %822 = vmatpush1.bf16.msra.mxu0 0
      %823 = vmatprep.subr.bf16.mxu0 0
      %824 = vmatpush1.bf16.msra.mxu0 0
      %825 = vmatprep.subr.bf16.mxu0 0
      %826 = vmatpush1.bf16.msra.mxu0 0
      %827 = vmatprep.subr.bf16.mxu0 0
      %828 = vmatpush1.bf16.msra.mxu0 0
      %829 = vmatprep.subr.bf16.mxu0 0
      %830 = vmatpush1.bf16.msra.mxu0 0
      %831 = vmatprep.subr.bf16.mxu0 0
      %832 = vmatpush1.bf16.msra.mxu0 0
      %833 = vmatprep.subr.bf16.mxu0 0
      %834 = vmatpush1.bf16.msra.mxu0 0
      %835 = vmatprep.subr.bf16.mxu0 0
      %836 = vmatpush1.bf16.msra.mxu0 0
      %837 = vmatprep.subr.bf16.mxu0 0
      %838 = vmatpush1.bf16.msra.mxu0 0
      %839 = vmatprep.subr.bf16.mxu0 0
      %840 = vmatpush1.bf16.msra.mxu0 0
      %841 = vmatprep.subr.bf16.mxu0 0
      %842 = vmatpush1.bf16.msra.mxu0 0
      %843 = vmatprep.mubr.bf16.mxu0 0
      %844 = vmatmul.mubr.bf16.gmra.mrb[0].mxu0 %v797
      %v845 = vpop.f32.mrb[0].mxu0
      %v846 = vadd.f32 0.0, %v845
      %v847 = vpop.f32.mrb[0].mxu0
      %v848 = vpop.f32.mrb[0].mxu0
      %v849 = vadd.f32 0.0, %v848
      %v850 = vpop.f32.mrb[0].mxu0
      %851 = vmatprep.mubr.bf16.mxu0 0
      %852 = vmatmul.mubr.bf16.gmra.mrb[0].mxu0 %v800
      %v853 = vpop.f32.mrb[0].mxu0
      %v854 = vadd.f32 0.0, %v853
      %v855 = vpop.f32.mrb[0].mxu0
      %v856 = vpop.f32.mrb[0].mxu0
      %v857 = vadd.f32 0.0, %v856
      %v858 = vpop.f32.mrb[0].mxu0
      %859 = vmatprep.mubr.bf16.mxu0 0
      %860 = vmatmul.mubr.bf16.gmra.mrb[0].mxu0 %v803
      %v861 = vpop.f32.mrb[0].mxu0
      %v862 = vadd.f32 0.0, %v861
      %v863 = vpop.f32.mrb[0].mxu0
      %v864 = vpop.f32.mrb[0].mxu0
      %v865 = vadd.f32 0.0, %v864
      %v866 = vpop.f32.mrb[0].mxu0
      %867 = vmatprep.mubr.bf16.mxu0 0
      %868 = vmatmul.mubr.bf16.gmra.mrb[0].mxu0 %v806
      %v869 = vpop.f32.mrb[0].mxu0
      %v870 = vadd.f32 0.0, %v869
      %v871 = vpop.f32.mrb[0].mxu0
      %v872 = vpop.f32.mrb[0].mxu0
      %v873 = vadd.f32 0.0, %v872
      %v874 = vpop.f32.mrb[0].mxu0
      %875 = vdwg.mxu0
      %v884 = vunpack.c.l.b16 %v741
      %v885 = vunpack.c.l.b16 %v742
      %v886 = vunpack.c.l.b16 %v743
      %v887 = vunpack.c.l.b16 %v744
      %v888 = vunpack.c.l.b16 %v745
      %v889 = vunpack.c.l.b16 %v746
      %v890 = vunpack.c.l.b16 %v747
      %v891 = vunpack.c.l.b16 %v748
      %v892 = vpack.c.b16 %v885, %v884
      %v893 = vpack.c.b16 %v887, %v886
      %v894 = vpack.c.b16 %v889, %v888
      %v895 = vpack.c.b16 %v891, %v890
      %v900 = vunpack.c.l.b16 %v749
      %v901 = vunpack.c.l.b16 %v750
      %v902 = vunpack.c.l.b16 %v751
      %v903 = vunpack.c.l.b16 %v752
      %v904 = vpack.c.b16 %v901, %v900
      %v905 = vpack.c.b16 %v903, %v902
      %v908 = vsel %vm259, %v892, 0
      %v911 = vsel %vm259, %v893, 0
      %v914 = vsel %vm259, %v894, 0
      %v917 = vsel %vm259, %v895, 0
      %v920 = vand.u32 %v905, %v275
      %922 = vmatprep.subr.bf16.mxu0 0
      %923 = vmatpush1.bf16.msra.mxu0 %v904
      %924 = vmatprep.subr.bf16.mxu0 0
      %925 = vmatpush1.bf16.msra.mxu0 %v920
      %926 = vmatprep.subr.bf16.mxu0 0
      %927 = vmatpush1.bf16.msra.mxu0 0
      %928 = vmatprep.subr.bf16.mxu0 0
      %929 = vmatpush1.bf16.msra.mxu0 0
      %930 = vmatprep.subr.bf16.mxu0 0
      %931 = vmatpush1.bf16.msra.mxu0 0
      %932 = vmatprep.subr.bf16.mxu0 0
      %933 = vmatpush1.bf16.msra.mxu0 0
      %934 = vmatprep.subr.bf16.mxu0 0
      %935 = vmatpush1.bf16.msra.mxu0 0
      %936 = vmatprep.subr.bf16.mxu0 0
      %937 = vmatpush1.bf16.msra.mxu0 0
      %938 = vmatprep.subr.bf16.mxu0 0
      %939 = vmatpush1.bf16.msra.mxu0 0
      %940 = vmatprep.subr.bf16.mxu0 0
      %941 = vmatpush1.bf16.msra.mxu0 0
      %942 = vmatprep.subr.bf16.mxu0 0
      %943 = vmatpush1.bf16.msra.mxu0 0
      %944 = vmatprep.subr.bf16.mxu0 0
      %945 = vmatpush1.bf16.msra.mxu0 0
      %946 = vmatprep.subr.bf16.mxu0 0
      %947 = vmatpush1.bf16.msra.mxu0 0
      %948 = vmatprep.subr.bf16.mxu0 0
      %949 = vmatpush1.bf16.msra.mxu0 0
      %950 = vmatprep.subr.bf16.mxu0 0
      %951 = vmatpush1.bf16.msra.mxu0 0
      %952 = vmatprep.subr.bf16.mxu0 0
      %953 = vmatpush1.bf16.msra.mxu0 0
      %954 = vmatprep.mubr.bf16.mxu0 0
      %955 = vmatmul.mubr.bf16.gmra.mrb[0].mxu0 %v908
      %v956 = vpop.f32.mrb[0].mxu0
      %v957 = vadd.f32 %v846, %v956
      %v958 = vpop.f32.mrb[0].mxu0
      %v959 = vpop.f32.mrb[0].mxu0
      %v960 = vadd.f32 %v849, %v959
      %v961 = vpop.f32.mrb[0].mxu0
      %962 = vmatprep.mubr.bf16.mxu0 0
      %963 = vmatmul.mubr.bf16.gmra.mrb[0].mxu0 %v911
      %v964 = vpop.f32.mrb[0].mxu0
      %v965 = vadd.f32 %v854, %v964
      %v966 = vpop.f32.mrb[0].mxu0
      %v967 = vpop.f32.mrb[0].mxu0
      %v968 = vadd.f32 %v857, %v967
      %v969 = vpop.f32.mrb[0].mxu0
      %970 = vmatprep.mubr.bf16.mxu0 0
      %971 = vmatmul.mubr.bf16.gmra.mrb[0].mxu0 %v914
      %v972 = vpop.f32.mrb[0].mxu0
      %v973 = vadd.f32 %v862, %v972
      %v974 = vpop.f32.mrb[0].mxu0
      %v975 = vpop.f32.mrb[0].mxu0
      %v976 = vadd.f32 %v865, %v975
      %v977 = vpop.f32.mrb[0].mxu0
      %978 = vmatprep.mubr.bf16.mxu0 0
      %979 = vmatmul.mubr.bf16.gmra.mrb[0].mxu0 %v917
      %v980 = vpop.f32.mrb[0].mxu0
      %v981 = vadd.f32 %v870, %v980
      %v982 = vpop.f32.mrb[0].mxu0
      %v983 = vpop.f32.mrb[0].mxu0
      %v984 = vadd.f32 %v873, %v983
      %v985 = vpop.f32.mrb[0].mxu0
      %986 = vdwg.mxu0
      %s987 = sadd.s32 %s195, 3
      %s988 = smul.u32 %s987, 8
      %s989 = smul.addr %s988, 4
      %s990 = scalar_lea.vmem %s183, %s989
      %v991 = vld [vmem:[%s990] sm:$0xf]
      %v992 = vld [vmem:[%s990 + $0x4] sm:$0xf]
      %v993 = vld [vmem:[%s990 + $0x8] sm:$0xf]
      %v994 = vld [vmem:[%s990 + $0xc] sm:$0xf]
      %v995 = vld [vmem:[%s990 + $0x10] sm:$0xf]
      %v996 = vld [vmem:[%s990 + $0x14] sm:$0xf]
      %v997 = vld [vmem:[%s990 + $0x18] sm:$0xf]
      %v998 = vld [vmem:[%s990 + $0x1c] sm:$0xf]
      %v999 = vld [vmem:[%s467] sm:$0xf]
      %v1000 = vld [vmem:[%s467 + $0x4] sm:$0xf]
      %v1001 = vld [vmem:[%s467 + $0x8] sm:$0xf]
      %v1002 = vld [vmem:[%s467 + $0xc] sm:$0x3]
      %v1011 = vunpack.c.l.b16 %v991
      %v1012 = vunpack.c.l.b16 %v992
      %v1013 = vunpack.c.l.b16 %v993
      %v1014 = vunpack.c.l.b16 %v994
      %v1015 = vunpack.c.l.b16 %v995
      %v1016 = vunpack.c.l.b16 %v996
      %v1017 = vunpack.c.l.b16 %v997
      %v1018 = vunpack.c.l.b16 %v998
      %v1019 = vpack.c.b16 %v1012, %v1011
      %v1020 = vpack.c.b16 %v1014, %v1013
      %v1021 = vpack.c.b16 %v1016, %v1015
      %v1022 = vpack.c.b16 %v1018, %v1017
      %v1027 = vunpack.c.l.b16 %v999
      %v1028 = vunpack.c.l.b16 %v1000
      %v1029 = vunpack.c.l.b16 %v1001
      %v1030 = vunpack.c.l.b16 %v1002
      %v1031 = vpack.c.b16 %v1028, %v1027
      %v1032 = vpack.c.b16 %v1030, %v1029
      %v1035 = vsel %vm259, %v1019, 0
      %v1038 = vsel %vm259, %v1020, 0
      %v1041 = vsel %vm259, %v1021, 0
      %v1044 = vsel %vm259, %v1022, 0
      %v1047 = vand.u32 %v1032, %v275
      %1049 = vmatprep.subr.bf16.mxu0 0
      %1050 = vmatpush1.bf16.msra.mxu0 %v1031
      %1051 = vmatprep.subr.bf16.mxu0 0
      %1052 = vmatpush1.bf16.msra.mxu0 %v1047
      %1053 = vmatprep.subr.bf16.mxu0 0
      %1054 = vmatpush1.bf16.msra.mxu0 0
      %1055 = vmatprep.subr.bf16.mxu0 0
      %1056 = vmatpush1.bf16.msra.mxu0 0
      %1057 = vmatprep.subr.bf16.mxu0 0
      %1058 = vmatpush1.bf16.msra.mxu0 0
      %1059 = vmatprep.subr.bf16.mxu0 0
      %1060 = vmatpush1.bf16.msra.mxu0 0
      %1061 = vmatprep.subr.bf16.mxu0 0
      %1062 = vmatpush1.bf16.msra.mxu0 0
      %1063 = vmatprep.subr.bf16.mxu0 0
      %1064 = vmatpush1.bf16.msra.mxu0 0
      %1065 = vmatprep.subr.bf16.mxu0 0
      %1066 = vmatpush1.bf16.msra.mxu0 0
      %1067 = vmatprep.subr.bf16.mxu0 0
      %1068 = vmatpush1.bf16.msra.mxu0 0
      %1069 = vmatprep.subr.bf16.mxu0 0
      %1070 = vmatpush1.bf16.msra.mxu0 0
      %1071 = vmatprep.subr.bf16.mxu0 0
      %1072 = vmatpush1.bf16.msra.mxu0 0
      %1073 = vmatprep.subr.bf16.mxu0 0
      %1074 = vmatpush1.bf16.msra.mxu0 0
      %1075 = vmatprep.subr.bf16.mxu0 0
      %1076 = vmatpush1.bf16.msra.mxu0 0
      %1077 = vmatprep.subr.bf16.mxu0 0
      %1078 = vmatpush1.bf16.msra.mxu0 0
      %1079 = vmatprep.subr.bf16.mxu0 0
      %1080 = vmatpush1.bf16.msra.mxu0 0
      %1081 = vmatprep.mubr.bf16.mxu0 0
      %1082 = vmatmul.mubr.bf16.gmra.mrb[0].mxu0 %v1035
      %v1083 = vpop.f32.mrb[0].mxu0
      %v1084 = vadd.f32 0.0, %v1083
      %v1085 = vpop.f32.mrb[0].mxu0
      %v1086 = vpop.f32.mrb[0].mxu0
      %v1087 = vadd.f32 0.0, %v1086
      %v1088 = vpop.f32.mrb[0].mxu0
      %1089 = vmatprep.mubr.bf16.mxu0 0
      %1090 = vmatmul.mubr.bf16.gmra.mrb[0].mxu0 %v1038
      %v1091 = vpop.f32.mrb[0].mxu0
      %v1092 = vadd.f32 0.0, %v1091
      %v1093 = vpop.f32.mrb[0].mxu0
      %v1094 = vpop.f32.mrb[0].mxu0
      %v1095 = vadd.f32 0.0, %v1094
      %v1096 = vpop.f32.mrb[0].mxu0
      %1097 = vmatprep.mubr.bf16.mxu0 0
      %1098 = vmatmul.mubr.bf16.gmra.mrb[0].mxu0 %v1041
      %v1099 = vpop.f32.mrb[0].mxu0
      %v1100 = vadd.f32 0.0, %v1099
      %v1101 = vpop.f32.mrb[0].mxu0
      %v1102 = vpop.f32.mrb[0].mxu0
      %v1103 = vadd.f32 0.0, %v1102
      %v1104 = vpop.f32.mrb[0].mxu0
      %1105 = vmatprep.mubr.bf16.mxu0 0
      %1106 = vmatmul.mubr.bf16.gmra.mrb[0].mxu0 %v1044
      %v1107 = vpop.f32.mrb[0].mxu0
      %v1108 = vadd.f32 0.0, %v1107
      %v1109 = vpop.f32.mrb[0].mxu0
      %v1110 = vpop.f32.mrb[0].mxu0
      %v1111 = vadd.f32 0.0, %v1110
      %v1112 = vpop.f32.mrb[0].mxu0
      %1113 = vdwg.mxu0
      %v1114 = vadd.f32 %v957, %v1084
      %v1115 = vadd.f32 %v960, %v1087
      %v1116 = vadd.f32 %v965, %v1092
      %v1117 = vadd.f32 %v968, %v1095
      %v1118 = vadd.f32 %v973, %v1100
      %v1119 = vadd.f32 %v976, %v1103
      %v1120 = vadd.f32 %v981, %v1108
      %v1121 = vadd.f32 %v984, %v1111
      %v1122 = vld [vmem:[%s2] sm:$0x1]
      %v1124 = vlaneseq
      %v1125 = vshrl.u32 %v1124, 7
      %v1126 = vsub.s32 0, %v1125
      %v1127 = vrot.slane %v1122, %v1126
      %v1129 = vadd.f32 %v1114, %v1127
      %v1130 = vadd.f32 %v1115, %v1127
      %v1131 = vadd.f32 %v1116, %v1127
      %v1132 = vadd.f32 %v1117, %v1127
      %v1133 = vadd.f32 %v1118, %v1127
      %v1134 = vadd.f32 %v1119, %v1127
      %v1135 = vadd.f32 %v1120, %v1127
      %v1136 = vadd.f32 %v1121, %v1127
      %v1137 = vmax.f32 %v1129, 0.0
      %v1138 = vmax.f32 %v1130, 0.0
      %v1139 = vmax.f32 %v1131, 0.0
      %v1140 = vmax.f32 %v1132, 0.0
      %v1141 = vmax.f32 %v1133, 0.0
      %v1142 = vmax.f32 %v1134, 0.0
      %v1143 = vmax.f32 %v1135, 0.0
      %v1144 = vmax.f32 %v1136, 0.0
      %v1153 = vcombine.high %v1137, %v1137
      %v1154 = vcombine.high %v1138, %v1138
      %v1155 = vcombine.high %v1139, %v1139
      %v1156 = vcombine.high %v1140, %v1140
      %v1157 = vcombine.high %v1141, %v1141
      %v1158 = vcombine.high %v1142, %v1142
      %v1159 = vcombine.high %v1143, %v1143
      %v1160 = vcombine.high %v1144, %v1144
      %v1169 = vrot.slane %v1153, 7
      %v1170 = vrot.slane %v1154, 7
      %v1171 = vrot.slane %v1155, 7
      %v1172 = vrot.slane %v1156, 7
      %v1173 = vrot.slane %v1157, 7
      %v1174 = vrot.slane %v1158, 7
      %v1175 = vrot.slane %v1159, 7
      %v1176 = vrot.slane %v1160, 7
      %v1185 = vsel %vm654, 0.0, %v1169
      %v1186 = vsel %vm654, 0.0, %v1170
      %v1187 = vsel %vm654, 0.0, %v1171
      %v1188 = vsel %vm654, 0.0, %v1172
      %v1189 = vsel %vm654, 0.0, %v1173
      %v1190 = vsel %vm654, 0.0, %v1174
      %v1191 = vsel %vm654, 0.0, %v1175
      %v1192 = vsel %vm654, 0.0, %v1176
      %v1193 = vmax.f32 %v1137, %v1153
      %v1194 = vmax.f32 %v1138, %v1154
      %v1195 = vmax.f32 %v1139, %v1155
      %v1196 = vmax.f32 %v1140, %v1156
      %v1197 = vmax.f32 %v1141, %v1157
      %v1198 = vmax.f32 %v1142, %v1158
      %v1199 = vmax.f32 %v1143, %v1159
      %v1200 = vmax.f32 %v1144, %v1160
      %v1201 = vmax.f32 %v1193, %v1185
      %v1202 = vmax.f32 %v1194, %v1186
      %v1203 = vmax.f32 %v1195, %v1187
      %v1204 = vmax.f32 %v1196, %v1188
      %v1205 = vmax.f32 %v1197, %v1189
      %v1206 = vmax.f32 %v1198, %v1190
      %v1207 = vmax.f32 %v1199, %v1191
      %v1208 = vmax.f32 %v1200, %v1192
      %v1209 = vmax.f32 %v1201, %v1202
      %v1210 = vmax.f32 %v1203, %v1204
      %v1211 = vmax.f32 %v1205, %v1206
      %v1212 = vmax.f32 %v1207, %v1208
      %v1213 = vmax.f32 %v1209, 0.0
      %v1214 = vmax.f32 %v1210, %v1202
      %v1215 = vmax.f32 %v1211, %v1204
      %v1216 = vmax.f32 %v1212, %v1206
      %v1217 = vcombine.low %v1213, %v1215
      %v1219 = vunpack.c.l.s4 1983009808
      %v1220 = vunpack.c.0.s8 %v1219
      %v1221 = vlaneseq
      %v1222 = vshrl.u32 %v1221, 7
      %v1223 = vsub.s32 %v1220, %v1222
      %v1224 = vrot.slane %v1217, %v1223
      %v1225 = vcombine.low %v1214, %v1216
      %v1227 = vunpack.c.l.s4 1983009808
      %v1228 = vunpack.c.0.s8 %v1227
      %v1229 = vlaneseq
      %v1230 = vshrl.u32 %v1229, 7
      %v1231 = vsub.s32 %v1228, %v1230
      %v1232 = vrot.slane %v1225, %v1231
      %v1233 = vcombine.low %v1224, %v1232
      %v1234 = vcombine.high %v1224, %v1232
      %v1236 = vunpack.c.l.s4 1934713408
      %v1237 = vunpack.c.0.s8 %v1236
      %v1238 = vlaneseq
      %v1239 = vshrl.u32 %v1238, 7
      %v1240 = vsub.s32 %v1237, %v1239
      %v1241 = vrot.slane %v1233, %v1240
      %v1243 = vunpack.c.l.s4 1934713408
      %v1244 = vunpack.c.0.s8 %v1243
      %v1245 = vlaneseq
      %v1246 = vshrl.u32 %v1245, 7
      %v1247 = vsub.s32 %v1244, %v1246
      %v1248 = vrot.slane %v1234, %v1247
      %v1249 = vcombine.high %v1241, 0.0
      %v1250 = vcombine.high %v1248, 0.0
      %1252 = vrot.lane.b32.xlu0 %v1249, 8
      %v1253 = vpop.permute.xlu0 %1252
      %1256 = vrot.lane.b32.xlu0 %v1248, 16
      %v1257 = vpop.permute.xlu0 %1256
      %1260 = vrot.lane.b32.xlu0 %v1250, 24
      %v1261 = vpop.permute.xlu0 %1260
      %v1263 = vsel %vm733, %v1241, %v1253
      %v1264 = vsel %vm735, %v1263, %v1257
      %v1265 = vsel %vm737, %v1264, %v1261
      %s1266 = scalar_lea.vmem %s192, 4
      %1267 = vst.msk [vmem:[%s1266] sm:$0xf] %vm739, %v1265
      %v1268 = vld [vmem:[%s458] sm:$0xf]
      %v1269 = vld [vmem:[%s458 + $0x4] sm:$0xf]
      %v1270 = vld [vmem:[%s458 + $0x8] sm:$0xf]
      %v1271 = vld [vmem:[%s458 + $0xc] sm:$0xf]
      %v1272 = vld [vmem:[%s458 + $0x10] sm:$0xf]
      %v1273 = vld [vmem:[%s458 + $0x14] sm:$0xf]
      %v1274 = vld [vmem:[%s458 + $0x18] sm:$0xf]
      %v1275 = vld [vmem:[%s458 + $0x1c] sm:$0xf]
      %v1276 = vld [vmem:[%s1] sm:$0xf]
      %v1277 = vld [vmem:[%s1 + $0x4] sm:$0xf]
      %v1278 = vld [vmem:[%s1 + $0x8] sm:$0xf]
      %v1279 = vld [vmem:[%s1 + $0xc] sm:$0x3]
      %v1280 = vld [vmem:[%s990] sm:$0xf]
      %v1281 = vld [vmem:[%s990 + $0x4] sm:$0xf]
      %v1282 = vld [vmem:[%s990 + $0x8] sm:$0xf]
      %v1283 = vld [vmem:[%s990 + $0xc] sm:$0xf]
      %v1284 = vld [vmem:[%s990 + $0x10] sm:$0xf]
      %v1285 = vld [vmem:[%s990 + $0x14] sm:$0xf]
      %v1286 = vld [vmem:[%s990 + $0x18] sm:$0xf]
      %v1287 = vld [vmem:[%s990 + $0x1c] sm:$0xf]
      %v1288 = vld [vmem:[%s223] sm:$0xf]
      %v1289 = vld [vmem:[%s223 + $0x4] sm:$0xf]
      %v1290 = vld [vmem:[%s223 + $0x8] sm:$0xf]
      %v1291 = vld [vmem:[%s223 + $0xc] sm:$0x3]
      %v1300 = vunpack.c.l.b16 %v1280
      %v1301 = vunpack.c.l.b16 %v1281
      %v1302 = vunpack.c.l.b16 %v1282
      %v1303 = vunpack.c.l.b16 %v1283
      %v1304 = vunpack.c.l.b16 %v1284
      %v1305 = vunpack.c.l.b16 %v1285
      %v1306 = vunpack.c.l.b16 %v1286
      %v1307 = vunpack.c.l.b16 %v1287
      %v1308 = vpack.c.b16 %v1301, %v1300
      %v1309 = vpack.c.b16 %v1303, %v1302
      %v1310 = vpack.c.b16 %v1305, %v1304
      %v1311 = vpack.c.b16 %v1307, %v1306
      %v1316 = vunpack.c.l.b16 %v1288
      %v1317 = vunpack.c.l.b16 %v1289
      %v1318 = vunpack.c.l.b16 %v1290
      %v1319 = vunpack.c.l.b16 %v1291
      %v1320 = vpack.c.b16 %v1317, %v1316
      %v1321 = vpack.c.b16 %v1319, %v1318
      %v1324 = vsel %vm259, %v1308, 0
      %v1327 = vsel %vm259, %v1309, 0
      %v1330 = vsel %vm259, %v1310, 0
      %v1333 = vsel %vm259, %v1311, 0
      %v1336 = vand.u32 %v1321, %v275
      %1338 = vmatprep.subr.bf16.mxu0 0
      %1339 = vmatpush1.bf16.msra.mxu0 %v1320
      %1340 = vmatprep.subr.bf16.mxu0 0
      %1341 = vmatpush1.bf16.msra.mxu0 %v1336
      %1342 = vmatprep.subr.bf16.mxu0 0
      %1343 = vmatpush1.bf16.msra.mxu0 0
      %1344 = vmatprep.subr.bf16.mxu0 0
      %1345 = vmatpush1.bf16.msra.mxu0 0
      %1346 = vmatprep.subr.bf16.mxu0 0
      %1347 = vmatpush1.bf16.msra.mxu0 0
      %1348 = vmatprep.subr.bf16.mxu0 0
      %1349 = vmatpush1.bf16.msra.mxu0 0
      %1350 = vmatprep.subr.bf16.mxu0 0
      %1351 = vmatpush1.bf16.msra.mxu0 0
      %1352 = vmatprep.subr.bf16.mxu0 0
      %1353 = vmatpush1.bf16.msra.mxu0 0
      %1354 = vmatprep.subr.bf16.mxu0 0
      %1355 = vmatpush1.bf16.msra.mxu0 0
      %1356 = vmatprep.subr.bf16.mxu0 0
      %1357 = vmatpush1.bf16.msra.mxu0 0
      %1358 = vmatprep.subr.bf16.mxu0 0
      %1359 = vmatpush1.bf16.msra.mxu0 0
      %1360 = vmatprep.subr.bf16.mxu0 0
      %1361 = vmatpush1.bf16.msra.mxu0 0
      %1362 = vmatprep.subr.bf16.mxu0 0
      %1363 = vmatpush1.bf16.msra.mxu0 0
      %1364 = vmatprep.subr.bf16.mxu0 0
      %1365 = vmatpush1.bf16.msra.mxu0 0
      %1366 = vmatprep.subr.bf16.mxu0 0
      %1367 = vmatpush1.bf16.msra.mxu0 0
      %1368 = vmatprep.subr.bf16.mxu0 0
      %1369 = vmatpush1.bf16.msra.mxu0 0
      %1370 = vmatprep.mubr.bf16.mxu0 0
      %1371 = vmatmul.mubr.bf16.gmra.mrb[0].mxu0 %v1324
      %v1372 = vpop.f32.mrb[0].mxu0
      %v1373 = vadd.f32 0.0, %v1372
      %v1374 = vpop.f32.mrb[0].mxu0
      %v1375 = vpop.f32.mrb[0].mxu0
      %v1376 = vadd.f32 0.0, %v1375
      %v1377 = vpop.f32.mrb[0].mxu0
      %1378 = vmatprep.mubr.bf16.mxu0 0
      %1379 = vmatmul.mubr.bf16.gmra.mrb[0].mxu0 %v1327
      %v1380 = vpop.f32.mrb[0].mxu0
      %v1381 = vadd.f32 0.0, %v1380
      %v1382 = vpop.f32.mrb[0].mxu0
      %v1383 = vpop.f32.mrb[0].mxu0
      %v1384 = vadd.f32 0.0, %v1383
      %v1385 = vpop.f32.mrb[0].mxu0
      %1386 = vmatprep.mubr.bf16.mxu0 0
      %1387 = vmatmul.mubr.bf16.gmra.mrb[0].mxu0 %v1330
      %v1388 = vpop.f32.mrb[0].mxu0
      %v1389 = vadd.f32 0.0, %v1388
      %v1390 = vpop.f32.mrb[0].mxu0
      %v1391 = vpop.f32.mrb[0].mxu0
      %v1392 = vadd.f32 0.0, %v1391
      %v1393 = vpop.f32.mrb[0].mxu0
      %1394 = vmatprep.mubr.bf16.mxu0 0
      %1395 = vmatmul.mubr.bf16.gmra.mrb[0].mxu0 %v1333
      %v1396 = vpop.f32.mrb[0].mxu0
      %v1397 = vadd.f32 0.0, %v1396
      %v1398 = vpop.f32.mrb[0].mxu0
      %v1399 = vpop.f32.mrb[0].mxu0
      %v1400 = vadd.f32 0.0, %v1399
      %v1401 = vpop.f32.mrb[0].mxu0
      %1402 = vdwg.mxu0
      %v1411 = vunpack.c.l.b16 %v1268
      %v1412 = vunpack.c.l.b16 %v1269
      %v1413 = vunpack.c.l.b16 %v1270
      %v1414 = vunpack.c.l.b16 %v1271
      %v1415 = vunpack.c.l.b16 %v1272
      %v1416 = vunpack.c.l.b16 %v1273
      %v1417 = vunpack.c.l.b16 %v1274
      %v1418 = vunpack.c.l.b16 %v1275
      %v1419 = vpack.c.b16 %v1412, %v1411
      %v1420 = vpack.c.b16 %v1414, %v1413
      %v1421 = vpack.c.b16 %v1416, %v1415
      %v1422 = vpack.c.b16 %v1418, %v1417
      %v1427 = vunpack.c.l.b16 %v1276
      %v1428 = vunpack.c.l.b16 %v1277
      %v1429 = vunpack.c.l.b16 %v1278
      %v1430 = vunpack.c.l.b16 %v1279
      %v1431 = vpack.c.b16 %v1428, %v1427
      %v1432 = vpack.c.b16 %v1430, %v1429
      %v1435 = vsel %vm259, %v1419, 0
      %v1438 = vsel %vm259, %v1420, 0
      %v1441 = vsel %vm259, %v1421, 0
      %v1444 = vsel %vm259, %v1422, 0
      %v1447 = vand.u32 %v1432, %v275
      %1449 = vmatprep.subr.bf16.mxu0 0
      %1450 = vmatpush1.bf16.msra.mxu0 %v1431
      %1451 = vmatprep.subr.bf16.mxu0 0
      %1452 = vmatpush1.bf16.msra.mxu0 %v1447
      %1453 = vmatprep.subr.bf16.mxu0 0
      %1454 = vmatpush1.bf16.msra.mxu0 0
      %1455 = vmatprep.subr.bf16.mxu0 0
      %1456 = vmatpush1.bf16.msra.mxu0 0
      %1457 = vmatprep.subr.bf16.mxu0 0
      %1458 = vmatpush1.bf16.msra.mxu0 0
      %1459 = vmatprep.subr.bf16.mxu0 0
      %1460 = vmatpush1.bf16.msra.mxu0 0
      %1461 = vmatprep.subr.bf16.mxu0 0
      %1462 = vmatpush1.bf16.msra.mxu0 0
      %1463 = vmatprep.subr.bf16.mxu0 0
      %1464 = vmatpush1.bf16.msra.mxu0 0
      %1465 = vmatprep.subr.bf16.mxu0 0
      %1466 = vmatpush1.bf16.msra.mxu0 0
      %1467 = vmatprep.subr.bf16.mxu0 0
      %1468 = vmatpush1.bf16.msra.mxu0 0
      %1469 = vmatprep.subr.bf16.mxu0 0
      %1470 = vmatpush1.bf16.msra.mxu0 0
      %1471 = vmatprep.subr.bf16.mxu0 0
      %1472 = vmatpush1.bf16.msra.mxu0 0
      %1473 = vmatprep.subr.bf16.mxu0 0
      %1474 = vmatpush1.bf16.msra.mxu0 0
      %1475 = vmatprep.subr.bf16.mxu0 0
      %1476 = vmatpush1.bf16.msra.mxu0 0
      %1477 = vmatprep.subr.bf16.mxu0 0
      %1478 = vmatpush1.bf16.msra.mxu0 0
      %1479 = vmatprep.subr.bf16.mxu0 0
      %1480 = vmatpush1.bf16.msra.mxu0 0
      %1481 = vmatprep.mubr.bf16.mxu0 0
      %1482 = vmatmul.mubr.bf16.gmra.mrb[0].mxu0 %v1435
      %v1483 = vpop.f32.mrb[0].mxu0
      %v1484 = vadd.f32 %v1373, %v1483
      %v1485 = vpop.f32.mrb[0].mxu0
      %v1486 = vpop.f32.mrb[0].mxu0
      %v1487 = vadd.f32 %v1376, %v1486
      %v1488 = vpop.f32.mrb[0].mxu0
      %1489 = vmatprep.mubr.bf16.mxu0 0
      %1490 = vmatmul.mubr.bf16.gmra.mrb[0].mxu0 %v1438
      %v1491 = vpop.f32.mrb[0].mxu0
      %v1492 = vadd.f32 %v1381, %v1491
      %v1493 = vpop.f32.mrb[0].mxu0
      %v1494 = vpop.f32.mrb[0].mxu0
      %v1495 = vadd.f32 %v1384, %v1494
      %v1496 = vpop.f32.mrb[0].mxu0
      %1497 = vmatprep.mubr.bf16.mxu0 0
      %1498 = vmatmul.mubr.bf16.gmra.mrb[0].mxu0 %v1441
      %v1499 = vpop.f32.mrb[0].mxu0
      %v1500 = vadd.f32 %v1389, %v1499
      %v1501 = vpop.f32.mrb[0].mxu0
      %v1502 = vpop.f32.mrb[0].mxu0
      %v1503 = vadd.f32 %v1392, %v1502
      %v1504 = vpop.f32.mrb[0].mxu0
      %1505 = vmatprep.mubr.bf16.mxu0 0
      %1506 = vmatmul.mubr.bf16.gmra.mrb[0].mxu0 %v1444
      %v1507 = vpop.f32.mrb[0].mxu0
      %v1508 = vadd.f32 %v1397, %v1507
      %v1509 = vpop.f32.mrb[0].mxu0
      %v1510 = vpop.f32.mrb[0].mxu0
      %v1511 = vadd.f32 %v1400, %v1510
      %v1512 = vpop.f32.mrb[0].mxu0
      %1513 = vdwg.mxu0
      %s1514 = sadd.s32 %s195, 4
      %s1515 = smul.u32 %s1514, 8
      %s1516 = smul.addr %s1515, 4
      %s1517 = scalar_lea.vmem %s183, %s1516
      %v1518 = vld [vmem:[%s1517] sm:$0xf]
      %v1519 = vld [vmem:[%s1517 + $0x4] sm:$0xf]
      %v1520 = vld [vmem:[%s1517 + $0x8] sm:$0xf]
      %v1521 = vld [vmem:[%s1517 + $0xc] sm:$0xf]
      %v1522 = vld [vmem:[%s1517 + $0x10] sm:$0xf]
      %v1523 = vld [vmem:[%s1517 + $0x14] sm:$0xf]
      %v1524 = vld [vmem:[%s1517 + $0x18] sm:$0xf]
      %v1525 = vld [vmem:[%s1517 + $0x1c] sm:$0xf]
      %v1526 = vld [vmem:[%s467] sm:$0xf]
      %v1527 = vld [vmem:[%s467 + $0x4] sm:$0xf]
      %v1528 = vld [vmem:[%s467 + $0x8] sm:$0xf]
      %v1529 = vld [vmem:[%s467 + $0xc] sm:$0x3]
      %v1538 = vunpack.c.l.b16 %v1518
      %v1539 = vunpack.c.l.b16 %v1519
      %v1540 = vunpack.c.l.b16 %v1520
      %v1541 = vunpack.c.l.b16 %v1521
      %v1542 = vunpack.c.l.b16 %v1522
      %v1543 = vunpack.c.l.b16 %v1523
      %v1544 = vunpack.c.l.b16 %v1524
      %v1545 = vunpack.c.l.b16 %v1525
      %v1546 = vpack.c.b16 %v1539, %v1538
      %v1547 = vpack.c.b16 %v1541, %v1540
      %v1548 = vpack.c.b16 %v1543, %v1542
      %v1549 = vpack.c.b16 %v1545, %v1544
      %v1554 = vunpack.c.l.b16 %v1526
      %v1555 = vunpack.c.l.b16 %v1527
      %v1556 = vunpack.c.l.b16 %v1528
      %v1557 = vunpack.c.l.b16 %v1529
      %v1558 = vpack.c.b16 %v1555, %v1554
      %v1559 = vpack.c.b16 %v1557, %v1556
      %v1562 = vsel %vm259, %v1546, 0
      %v1565 = vsel %vm259, %v1547, 0
      %v1568 = vsel %vm259, %v1548, 0
      %v1571 = vsel %vm259, %v1549, 0
      %v1574 = vand.u32 %v1559, %v275
      %1576 = vmatprep.subr.bf16.mxu0 0
      %1577 = vmatpush1.bf16.msra.mxu0 %v1558
      %1578 = vmatprep.subr.bf16.mxu0 0
      %1579 = vmatpush1.bf16.msra.mxu0 %v1574
      %1580 = vmatprep.subr.bf16.mxu0 0
      %1581 = vmatpush1.bf16.msra.mxu0 0
      %1582 = vmatprep.subr.bf16.mxu0 0
      %1583 = vmatpush1.bf16.msra.mxu0 0
      %1584 = vmatprep.subr.bf16.mxu0 0
      %1585 = vmatpush1.bf16.msra.mxu0 0
      %1586 = vmatprep.subr.bf16.mxu0 0
      %1587 = vmatpush1.bf16.msra.mxu0 0
      %1588 = vmatprep.subr.bf16.mxu0 0
      %1589 = vmatpush1.bf16.msra.mxu0 0
      %1590 = vmatprep.subr.bf16.mxu0 0
      %1591 = vmatpush1.bf16.msra.mxu0 0
      %1592 = vmatprep.subr.bf16.mxu0 0
      %1593 = vmatpush1.bf16.msra.mxu0 0
      %1594 = vmatprep.subr.bf16.mxu0 0
      %1595 = vmatpush1.bf16.msra.mxu0 0
      %1596 = vmatprep.subr.bf16.mxu0 0
      %1597 = vmatpush1.bf16.msra.mxu0 0
      %1598 = vmatprep.subr.bf16.mxu0 0
      %1599 = vmatpush1.bf16.msra.mxu0 0
      %1600 = vmatprep.subr.bf16.mxu0 0
      %1601 = vmatpush1.bf16.msra.mxu0 0
      %1602 = vmatprep.subr.bf16.mxu0 0
      %1603 = vmatpush1.bf16.msra.mxu0 0
      %1604 = vmatprep.subr.bf16.mxu0 0
      %1605 = vmatpush1.bf16.msra.mxu0 0
      %1606 = vmatprep.subr.bf16.mxu0 0
      %1607 = vmatpush1.bf16.msra.mxu0 0
      %1608 = vmatprep.mubr.bf16.mxu0 0
      %1609 = vmatmul.mubr.bf16.gmra.mrb[0].mxu0 %v1562
      %v1610 = vpop.f32.mrb[0].mxu0
      %v1611 = vadd.f32 0.0, %v1610
      %v1612 = vpop.f32.mrb[0].mxu0
      %v1613 = vpop.f32.mrb[0].mxu0
      %v1614 = vadd.f32 0.0, %v1613
      %v1615 = vpop.f32.mrb[0].mxu0
      %1616 = vmatprep.mubr.bf16.mxu0 0
      %1617 = vmatmul.mubr.bf16.gmra.mrb[0].mxu0 %v1565
      %v1618 = vpop.f32.mrb[0].mxu0
      %v1619 = vadd.f32 0.0, %v1618
      %v1620 = vpop.f32.mrb[0].mxu0
      %v1621 = vpop.f32.mrb[0].mxu0
      %v1622 = vadd.f32 0.0, %v1621
      %v1623 = vpop.f32.mrb[0].mxu0
      %1624 = vmatprep.mubr.bf16.mxu0 0
      %1625 = vmatmul.mubr.bf16.gmra.mrb[0].mxu0 %v1568
      %v1626 = vpop.f32.mrb[0].mxu0
      %v1627 = vadd.f32 0.0, %v1626
      %v1628 = vpop.f32.mrb[0].mxu0
      %v1629 = vpop.f32.mrb[0].mxu0
      %v1630 = vadd.f32 0.0, %v1629
      %v1631 = vpop.f32.mrb[0].mxu0
      %1632 = vmatprep.mubr.bf16.mxu0 0
      %1633 = vmatmul.mubr.bf16.gmra.mrb[0].mxu0 %v1571
      %v1634 = vpop.f32.mrb[0].mxu0
      %v1635 = vadd.f32 0.0, %v1634
      %v1636 = vpop.f32.mrb[0].mxu0
      %v1637 = vpop.f32.mrb[0].mxu0
      %v1638 = vadd.f32 0.0, %v1637
      %v1639 = vpop.f32.mrb[0].mxu0
      %1640 = vdwg.mxu0
      %v1641 = vadd.f32 %v1484, %v1611
      %v1642 = vadd.f32 %v1487, %v1614
      %v1643 = vadd.f32 %v1492, %v1619
      %v1644 = vadd.f32 %v1495, %v1622
      %v1645 = vadd.f32 %v1500, %v1627
      %v1646 = vadd.f32 %v1503, %v1630
      %v1647 = vadd.f32 %v1508, %v1635
      %v1648 = vadd.f32 %v1511, %v1638
      %v1649 = vld [vmem:[%s2] sm:$0x1]
      %v1651 = vlaneseq
      %v1652 = vshrl.u32 %v1651, 7
      %v1653 = vsub.s32 0, %v1652
      %v1654 = vrot.slane %v1649, %v1653
      %v1656 = vadd.f32 %v1641, %v1654
      %v1657 = vadd.f32 %v1642, %v1654
      %v1658 = vadd.f32 %v1643, %v1654
      %v1659 = vadd.f32 %v1644, %v1654
      %v1660 = vadd.f32 %v1645, %v1654
      %v1661 = vadd.f32 %v1646, %v1654
      %v1662 = vadd.f32 %v1647, %v1654
      %v1663 = vadd.f32 %v1648, %v1654
      %v1664 = vmax.f32 %v1656, 0.0
      %v1665 = vmax.f32 %v1657, 0.0
      %v1666 = vmax.f32 %v1658, 0.0
      %v1667 = vmax.f32 %v1659, 0.0
      %v1668 = vmax.f32 %v1660, 0.0
      %v1669 = vmax.f32 %v1661, 0.0
      %v1670 = vmax.f32 %v1662, 0.0
      %v1671 = vmax.f32 %v1663, 0.0
      %v1680 = vcombine.high %v1664, %v1664
      %v1681 = vcombine.high %v1665, %v1665
      %v1682 = vcombine.high %v1666, %v1666
      %v1683 = vcombine.high %v1667, %v1667
      %v1684 = vcombine.high %v1668, %v1668
      %v1685 = vcombine.high %v1669, %v1669
      %v1686 = vcombine.high %v1670, %v1670
      %v1687 = vcombine.high %v1671, %v1671
      %v1696 = vrot.slane %v1680, 7
      %v1697 = vrot.slane %v1681, 7
      %v1698 = vrot.slane %v1682, 7
      %v1699 = vrot.slane %v1683, 7
      %v1700 = vrot.slane %v1684, 7
      %v1701 = vrot.slane %v1685, 7
      %v1702 = vrot.slane %v1686, 7
      %v1703 = vrot.slane %v1687, 7
      %v1712 = vsel %vm654, 0.0, %v1696
      %v1713 = vsel %vm654, 0.0, %v1697
      %v1714 = vsel %vm654, 0.0, %v1698
      %v1715 = vsel %vm654, 0.0, %v1699
      %v1716 = vsel %vm654, 0.0, %v1700
      %v1717 = vsel %vm654, 0.0, %v1701
      %v1718 = vsel %vm654, 0.0, %v1702
      %v1719 = vsel %vm654, 0.0, %v1703
      %v1720 = vmax.f32 %v1664, %v1680
      %v1721 = vmax.f32 %v1665, %v1681
      %v1722 = vmax.f32 %v1666, %v1682
      %v1723 = vmax.f32 %v1667, %v1683
      %v1724 = vmax.f32 %v1668, %v1684
      %v1725 = vmax.f32 %v1669, %v1685
      %v1726 = vmax.f32 %v1670, %v1686
      %v1727 = vmax.f32 %v1671, %v1687
      %v1728 = vmax.f32 %v1720, %v1712
      %v1729 = vmax.f32 %v1721, %v1713
      %v1730 = vmax.f32 %v1722, %v1714
      %v1731 = vmax.f32 %v1723, %v1715
      %v1732 = vmax.f32 %v1724, %v1716
      %v1733 = vmax.f32 %v1725, %v1717
      %v1734 = vmax.f32 %v1726, %v1718
      %v1735 = vmax.f32 %v1727, %v1719
      %v1736 = vmax.f32 %v1728, %v1729
      %v1737 = vmax.f32 %v1730, %v1731
      %v1738 = vmax.f32 %v1732, %v1733
      %v1739 = vmax.f32 %v1734, %v1735
      %v1740 = vmax.f32 %v1736, 0.0
      %v1741 = vmax.f32 %v1737, %v1729
      %v1742 = vmax.f32 %v1738, %v1731
      %v1743 = vmax.f32 %v1739, %v1733
      %v1744 = vcombine.low %v1740, %v1742
      %v1746 = vunpack.c.l.s4 1983009808
      %v1747 = vunpack.c.0.s8 %v1746
      %v1748 = vlaneseq
      %v1749 = vshrl.u32 %v1748, 7
      %v1750 = vsub.s32 %v1747, %v1749
      %v1751 = vrot.slane %v1744, %v1750
      %v1752 = vcombine.low %v1741, %v1743
      %v1754 = vunpack.c.l.s4 1983009808
      %v1755 = vunpack.c.0.s8 %v1754
      %v1756 = vlaneseq
      %v1757 = vshrl.u32 %v1756, 7
      %v1758 = vsub.s32 %v1755, %v1757
      %v1759 = vrot.slane %v1752, %v1758
      %v1760 = vcombine.low %v1751, %v1759
      %v1761 = vcombine.high %v1751, %v1759
      %v1763 = vunpack.c.l.s4 1934713408
      %v1764 = vunpack.c.0.s8 %v1763
      %v1765 = vlaneseq
      %v1766 = vshrl.u32 %v1765, 7
      %v1767 = vsub.s32 %v1764, %v1766
      %v1768 = vrot.slane %v1760, %v1767
      %v1770 = vunpack.c.l.s4 1934713408
      %v1771 = vunpack.c.0.s8 %v1770
      %v1772 = vlaneseq
      %v1773 = vshrl.u32 %v1772, 7
      %v1774 = vsub.s32 %v1771, %v1773
      %v1775 = vrot.slane %v1761, %v1774
      %v1776 = vcombine.high %v1768, 0.0
      %v1777 = vcombine.high %v1775, 0.0
      %1779 = vrot.lane.b32.xlu0 %v1776, 8
      %v1780 = vpop.permute.xlu0 %1779
      %1783 = vrot.lane.b32.xlu0 %v1775, 16
      %v1784 = vpop.permute.xlu0 %1783
      %1787 = vrot.lane.b32.xlu0 %v1777, 24
      %v1788 = vpop.permute.xlu0 %1787
      %v1790 = vsel %vm733, %v1768, %v1780
      %v1791 = vsel %vm735, %v1790, %v1784
      %v1792 = vsel %vm737, %v1791, %v1788
      %s1793 = scalar_lea.vmem %s192, 8
      %1794 = vst.msk [vmem:[%s1793] sm:$0xf] %vm739, %v1792
      %v1795 = vld [vmem:[%s990] sm:$0xf]
      %v1796 = vld [vmem:[%s990 + $0x4] sm:$0xf]
      %v1797 = vld [vmem:[%s990 + $0x8] sm:$0xf]
      %v1798 = vld [vmem:[%s990 + $0xc] sm:$0xf]
      %v1799 = vld [vmem:[%s990 + $0x10] sm:$0xf]
      %v1800 = vld [vmem:[%s990 + $0x14] sm:$0xf]
      %v1801 = vld [vmem:[%s990 + $0x18] sm:$0xf]
      %v1802 = vld [vmem:[%s990 + $0x1c] sm:$0xf]
      %v1803 = vld [vmem:[%s1] sm:$0xf]
      %v1804 = vld [vmem:[%s1 + $0x4] sm:$0xf]
      %v1805 = vld [vmem:[%s1 + $0x8] sm:$0xf]
      %v1806 = vld [vmem:[%s1 + $0xc] sm:$0x3]
      %v1807 = vld [vmem:[%s1517] sm:$0xf]
      %v1808 = vld [vmem:[%s1517 + $0x4] sm:$0xf]
      %v1809 = vld [vmem:[%s1517 + $0x8] sm:$0xf]
      %v1810 = vld [vmem:[%s1517 + $0xc] sm:$0xf]
      %v1811 = vld [vmem:[%s1517 + $0x10] sm:$0xf]
      %v1812 = vld [vmem:[%s1517 + $0x14] sm:$0xf]
      %v1813 = vld [vmem:[%s1517 + $0x18] sm:$0xf]
      %v1814 = vld [vmem:[%s1517 + $0x1c] sm:$0xf]
      %v1815 = vld [vmem:[%s223] sm:$0xf]
      %v1816 = vld [vmem:[%s223 + $0x4] sm:$0xf]
      %v1817 = vld [vmem:[%s223 + $0x8] sm:$0xf]
      %v1818 = vld [vmem:[%s223 + $0xc] sm:$0x3]
      %v1827 = vunpack.c.l.b16 %v1807
      %v1828 = vunpack.c.l.b16 %v1808
      %v1829 = vunpack.c.l.b16 %v1809
      %v1830 = vunpack.c.l.b16 %v1810
      %v1831 = vunpack.c.l.b16 %v1811
      %v1832 = vunpack.c.l.b16 %v1812
      %v1833 = vunpack.c.l.b16 %v1813
      %v1834 = vunpack.c.l.b16 %v1814
      %v1835 = vpack.c.b16 %v1828, %v1827
      %v1836 = vpack.c.b16 %v1830, %v1829
      %v1837 = vpack.c.b16 %v1832, %v1831
      %v1838 = vpack.c.b16 %v1834, %v1833
      %v1843 = vunpack.c.l.b16 %v1815
      %v1844 = vunpack.c.l.b16 %v1816
      %v1845 = vunpack.c.l.b16 %v1817
      %v1846 = vunpack.c.l.b16 %v1818
      %v1847 = vpack.c.b16 %v1844, %v1843
      %v1848 = vpack.c.b16 %v1846, %v1845
      %v1851 = vsel %vm259, %v1835, 0
      %v1854 = vsel %vm259, %v1836, 0
      %v1857 = vsel %vm259, %v1837, 0
      %v1860 = vsel %vm259, %v1838, 0
      %v1863 = vand.u32 %v1848, %v275
      %1865 = vmatprep.subr.bf16.mxu0 0
      %1866 = vmatpush1.bf16.msra.mxu0 %v1847
      %1867 = vmatprep.subr.bf16.mxu0 0
      %1868 = vmatpush1.bf16.msra.mxu0 %v1863
      %1869 = vmatprep.subr.bf16.mxu0 0
      %1870 = vmatpush1.bf16.msra.mxu0 0
      %1871 = vmatprep.subr.bf16.mxu0 0
      %1872 = vmatpush1.bf16.msra.mxu0 0
      %1873 = vmatprep.subr.bf16.mxu0 0
      %1874 = vmatpush1.bf16.msra.mxu0 0
      %1875 = vmatprep.subr.bf16.mxu0 0
      %1876 = vmatpush1.bf16.msra.mxu0 0
      %1877 = vmatprep.subr.bf16.mxu0 0
      %1878 = vmatpush1.bf16.msra.mxu0 0
      %1879 = vmatprep.subr.bf16.mxu0 0
      %1880 = vmatpush1.bf16.msra.mxu0 0
      %1881 = vmatprep.subr.bf16.mxu0 0
      %1882 = vmatpush1.bf16.msra.mxu0 0
      %1883 = vmatprep.subr.bf16.mxu0 0
      %1884 = vmatpush1.bf16.msra.mxu0 0
      %1885 = vmatprep.subr.bf16.mxu0 0
      %1886 = vmatpush1.bf16.msra.mxu0 0
      %1887 = vmatprep.subr.bf16.mxu0 0
      %1888 = vmatpush1.bf16.msra.mxu0 0
      %1889 = vmatprep.subr.bf16.mxu0 0
      %1890 = vmatpush1.bf16.msra.mxu0 0
      %1891 = vmatprep.subr.bf16.mxu0 0
      %1892 = vmatpush1.bf16.msra.mxu0 0
      %1893 = vmatprep.subr.bf16.mxu0 0
      %1894 = vmatpush1.bf16.msra.mxu0 0
      %1895 = vmatprep.subr.bf16.mxu0 0
      %1896 = vmatpush1.bf16.msra.mxu0 0
      %1897 = vmatprep.mubr.bf16.mxu0 0
      %1898 = vmatmul.mubr.bf16.gmra.mrb[0].mxu0 %v1851
      %v1899 = vpop.f32.mrb[0].mxu0
      %v1900 = vadd.f32 0.0, %v1899
      %v1901 = vpop.f32.mrb[0].mxu0
      %v1902 = vpop.f32.mrb[0].mxu0
      %v1903 = vadd.f32 0.0, %v1902
      %v1904 = vpop.f32.mrb[0].mxu0
      %1905 = vmatprep.mubr.bf16.mxu0 0
      %1906 = vmatmul.mubr.bf16.gmra.mrb[0].mxu0 %v1854
      %v1907 = vpop.f32.mrb[0].mxu0
      %v1908 = vadd.f32 0.0, %v1907
      %v1909 = vpop.f32.mrb[0].mxu0
      %v1910 = vpop.f32.mrb[0].mxu0
      %v1911 = vadd.f32 0.0, %v1910
      %v1912 = vpop.f32.mrb[0].mxu0
      %1913 = vmatprep.mubr.bf16.mxu0 0
      %1914 = vmatmul.mubr.bf16.gmra.mrb[0].mxu0 %v1857
      %v1915 = vpop.f32.mrb[0].mxu0
      %v1916 = vadd.f32 0.0, %v1915
      %v1917 = vpop.f32.mrb[0].mxu0
      %v1918 = vpop.f32.mrb[0].mxu0
      %v1919 = vadd.f32 0.0, %v1918
      %v1920 = vpop.f32.mrb[0].mxu0
      %1921 = vmatprep.mubr.bf16.mxu0 0
      %1922 = vmatmul.mubr.bf16.gmra.mrb[0].mxu0 %v1860
      %v1923 = vpop.f32.mrb[0].mxu0
      %v1924 = vadd.f32 0.0, %v1923
      %v1925 = vpop.f32.mrb[0].mxu0
      %v1926 = vpop.f32.mrb[0].mxu0
      %v1927 = vadd.f32 0.0, %v1926
      %v1928 = vpop.f32.mrb[0].mxu0
      %1929 = vdwg.mxu0
      %v1938 = vunpack.c.l.b16 %v1795
      %v1939 = vunpack.c.l.b16 %v1796
      %v1940 = vunpack.c.l.b16 %v1797
      %v1941 = vunpack.c.l.b16 %v1798
      %v1942 = vunpack.c.l.b16 %v1799
      %v1943 = vunpack.c.l.b16 %v1800
      %v1944 = vunpack.c.l.b16 %v1801
      %v1945 = vunpack.c.l.b16 %v1802
      %v1946 = vpack.c.b16 %v1939, %v1938
      %v1947 = vpack.c.b16 %v1941, %v1940
      %v1948 = vpack.c.b16 %v1943, %v1942
      %v1949 = vpack.c.b16 %v1945, %v1944
      %v1954 = vunpack.c.l.b16 %v1803
      %v1955 = vunpack.c.l.b16 %v1804
      %v1956 = vunpack.c.l.b16 %v1805
      %v1957 = vunpack.c.l.b16 %v1806
      %v1958 = vpack.c.b16 %v1955, %v1954
      %v1959 = vpack.c.b16 %v1957, %v1956
      %v1962 = vsel %vm259, %v1946, 0
      %v1965 = vsel %vm259, %v1947, 0
      %v1968 = vsel %vm259, %v1948, 0
      %v1971 = vsel %vm259, %v1949, 0
      %v1974 = vand.u32 %v1959, %v275
      %1976 = vmatprep.subr.bf16.mxu0 0
      %1977 = vmatpush1.bf16.msra.mxu0 %v1958
      %1978 = vmatprep.subr.bf16.mxu0 0
      %1979 = vmatpush1.bf16.msra.mxu0 %v1974
      %1980 = vmatprep.subr.bf16.mxu0 0
      %1981 = vmatpush1.bf16.msra.mxu0 0
      %1982 = vmatprep.subr.bf16.mxu0 0
      %1983 = vmatpush1.bf16.msra.mxu0 0
      %1984 = vmatprep.subr.bf16.mxu0 0
      %1985 = vmatpush1.bf16.msra.mxu0 0
      %1986 = vmatprep.subr.bf16.mxu0 0
      %1987 = vmatpush1.bf16.msra.mxu0 0
      %1988 = vmatprep.subr.bf16.mxu0 0
      %1989 = vmatpush1.bf16.msra.mxu0 0
      %1990 = vmatprep.subr.bf16.mxu0 0
      %1991 = vmatpush1.bf16.msra.mxu0 0
      %1992 = vmatprep.subr.bf16.mxu0 0
      %1993 = vmatpush1.bf16.msra.mxu0 0
      %1994 = vmatprep.subr.bf16.mxu0 0
      %1995 = vmatpush1.bf16.msra.mxu0 0
      %1996 = vmatprep.subr.bf16.mxu0 0
      %1997 = vmatpush1.bf16.msra.mxu0 0
      %1998 = vmatprep.subr.bf16.mxu0 0
      %1999 = vmatpush1.bf16.msra.mxu0 0
      %2000 = vmatprep.subr.bf16.mxu0 0
      %2001 = vmatpush1.bf16.msra.mxu0 0
      %2002 = vmatprep.subr.bf16.mxu0 0
      %2003 = vmatpush1.bf16.msra.mxu0 0
      %2004 = vmatprep.subr.bf16.mxu0 0
      %2005 = vmatpush1.bf16.msra.mxu0 0
      %2006 = vmatprep.subr.bf16.mxu0 0
      %2007 = vmatpush1.bf16.msra.mxu0 0
      %2008 = vmatprep.mubr.bf16.mxu0 0
      %2009 = vmatmul.mubr.bf16.gmra.mrb[0].mxu0 %v1962
      %v2010 = vpop.f32.mrb[0].mxu0
      %v2011 = vadd.f32 %v1900, %v2010
      %v2012 = vpop.f32.mrb[0].mxu0
      %v2013 = vpop.f32.mrb[0].mxu0
      %v2014 = vadd.f32 %v1903, %v2013
      %v2015 = vpop.f32.mrb[0].mxu0
      %2016 = vmatprep.mubr.bf16.mxu0 0
      %2017 = vmatmul.mubr.bf16.gmra.mrb[0].mxu0 %v1965
      %v2018 = vpop.f32.mrb[0].mxu0
      %v2019 = vadd.f32 %v1908, %v2018
      %v2020 = vpop.f32.mrb[0].mxu0
      %v2021 = vpop.f32.mrb[0].mxu0
      %v2022 = vadd.f32 %v1911, %v2021
      %v2023 = vpop.f32.mrb[0].mxu0
      %2024 = vmatprep.mubr.bf16.mxu0 0
      %2025 = vmatmul.mubr.bf16.gmra.mrb[0].mxu0 %v1968
      %v2026 = vpop.f32.mrb[0].mxu0
      %v2027 = vadd.f32 %v1916, %v2026
      %v2028 = vpop.f32.mrb[0].mxu0
      %v2029 = vpop.f32.mrb[0].mxu0
      %v2030 = vadd.f32 %v1919, %v2029
      %v2031 = vpop.f32.mrb[0].mxu0
      %2032 = vmatprep.mubr.bf16.mxu0 0
      %2033 = vmatmul.mubr.bf16.gmra.mrb[0].mxu0 %v1971
      %v2034 = vpop.f32.mrb[0].mxu0
      %v2035 = vadd.f32 %v1924, %v2034
      %v2036 = vpop.f32.mrb[0].mxu0
      %v2037 = vpop.f32.mrb[0].mxu0
      %v2038 = vadd.f32 %v1927, %v2037
      %v2039 = vpop.f32.mrb[0].mxu0
      %2040 = vdwg.mxu0
      %s2041 = sadd.s32 %s195, 5
      %s2042 = smul.u32 %s2041, 8
      %s2043 = smul.addr %s2042, 4
      %s2044 = scalar_lea.vmem %s183, %s2043
      %v2045 = vld [vmem:[%s2044] sm:$0xf]
      %v2046 = vld [vmem:[%s2044 + $0x4] sm:$0xf]
      %v2047 = vld [vmem:[%s2044 + $0x8] sm:$0xf]
      %v2048 = vld [vmem:[%s2044 + $0xc] sm:$0xf]
      %v2049 = vld [vmem:[%s2044 + $0x10] sm:$0xf]
      %v2050 = vld [vmem:[%s2044 + $0x14] sm:$0xf]
      %v2051 = vld [vmem:[%s2044 + $0x18] sm:$0xf]
      %v2052 = vld [vmem:[%s2044 + $0x1c] sm:$0xf]
      %v2053 = vld [vmem:[%s467] sm:$0xf]
      %v2054 = vld [vmem:[%s467 + $0x4] sm:$0xf]
      %v2055 = vld [vmem:[%s467 + $0x8] sm:$0xf]
      %v2056 = vld [vmem:[%s467 + $0xc] sm:$0x3]
      %v2065 = vunpack.c.l.b16 %v2045
      %v2066 = vunpack.c.l.b16 %v2046
      %v2067 = vunpack.c.l.b16 %v2047
      %v2068 = vunpack.c.l.b16 %v2048
      %v2069 = vunpack.c.l.b16 %v2049
      %v2070 = vunpack.c.l.b16 %v2050
      %v2071 = vunpack.c.l.b16 %v2051
      %v2072 = vunpack.c.l.b16 %v2052
      %v2073 = vpack.c.b16 %v2066, %v2065
      %v2074 = vpack.c.b16 %v2068, %v2067
      %v2075 = vpack.c.b16 %v2070, %v2069
      %v2076 = vpack.c.b16 %v2072, %v2071
      %v2081 = vunpack.c.l.b16 %v2053
      %v2082 = vunpack.c.l.b16 %v2054
      %v2083 = vunpack.c.l.b16 %v2055
      %v2084 = vunpack.c.l.b16 %v2056
      %v2085 = vpack.c.b16 %v2082, %v2081
      %v2086 = vpack.c.b16 %v2084, %v2083
      %v2089 = vsel %vm259, %v2073, 0
      %v2092 = vsel %vm259, %v2074, 0
      %v2095 = vsel %vm259, %v2075, 0
      %v2098 = vsel %vm259, %v2076, 0
      %v2101 = vand.u32 %v2086, %v275
      %2103 = vmatprep.subr.bf16.mxu0 0
      %2104 = vmatpush1.bf16.msra.mxu0 %v2085
      %2105 = vmatprep.subr.bf16.mxu0 0
      %2106 = vmatpush1.bf16.msra.mxu0 %v2101
      %2107 = vmatprep.subr.bf16.mxu0 0
      %2108 = vmatpush1.bf16.msra.mxu0 0
      %2109 = vmatprep.subr.bf16.mxu0 0
      %2110 = vmatpush1.bf16.msra.mxu0 0
      %2111 = vmatprep.subr.bf16.mxu0 0
      %2112 = vmatpush1.bf16.msra.mxu0 0
      %2113 = vmatprep.subr.bf16.mxu0 0
      %2114 = vmatpush1.bf16.msra.mxu0 0
      %2115 = vmatprep.subr.bf16.mxu0 0
      %2116 = vmatpush1.bf16.msra.mxu0 0
      %2117 = vmatprep.subr.bf16.mxu0 0
      %2118 = vmatpush1.bf16.msra.mxu0 0
      %2119 = vmatprep.subr.bf16.mxu0 0
      %2120 = vmatpush1.bf16.msra.mxu0 0
      %2121 = vmatprep.subr.bf16.mxu0 0
      %2122 = vmatpush1.bf16.msra.mxu0 0
      %2123 = vmatprep.subr.bf16.mxu0 0
      %2124 = vmatpush1.bf16.msra.mxu0 0
      %2125 = vmatprep.subr.bf16.mxu0 0
      %2126 = vmatpush1.bf16.msra.mxu0 0
      %2127 = vmatprep.subr.bf16.mxu0 0
      %2128 = vmatpush1.bf16.msra.mxu0 0
      %2129 = vmatprep.subr.bf16.mxu0 0
      %2130 = vmatpush1.bf16.msra.mxu0 0
      %2131 = vmatprep.subr.bf16.mxu0 0
      %2132 = vmatpush1.bf16.msra.mxu0 0
      %2133 = vmatprep.subr.bf16.mxu0 0
      %2134 = vmatpush1.bf16.msra.mxu0 0
      %2135 = vmatprep.mubr.bf16.mxu0 0
      %2136 = vmatmul.mubr.bf16.gmra.mrb[0].mxu0 %v2089
      %v2137 = vpop.f32.mrb[0].mxu0
      %v2138 = vadd.f32 0.0, %v2137
      %v2139 = vpop.f32.mrb[0].mxu0
      %v2140 = vpop.f32.mrb[0].mxu0
      %v2141 = vadd.f32 0.0, %v2140
      %v2142 = vpop.f32.mrb[0].mxu0
      %2143 = vmatprep.mubr.bf16.mxu0 0
      %2144 = vmatmul.mubr.bf16.gmra.mrb[0].mxu0 %v2092
      %v2145 = vpop.f32.mrb[0].mxu0
      %v2146 = vadd.f32 0.0, %v2145
      %v2147 = vpop.f32.mrb[0].mxu0
      %v2148 = vpop.f32.mrb[0].mxu0
      %v2149 = vadd.f32 0.0, %v2148
      %v2150 = vpop.f32.mrb[0].mxu0
      %2151 = vmatprep.mubr.bf16.mxu0 0
      %2152 = vmatmul.mubr.bf16.gmra.mrb[0].mxu0 %v2095
      %v2153 = vpop.f32.mrb[0].mxu0
      %v2154 = vadd.f32 0.0, %v2153
      %v2155 = vpop.f32.mrb[0].mxu0
      %v2156 = vpop.f32.mrb[0].mxu0
      %v2157 = vadd.f32 0.0, %v2156
      %v2158 = vpop.f32.mrb[0].mxu0
      %2159 = vmatprep.mubr.bf16.mxu0 0
      %2160 = vmatmul.mubr.bf16.gmra.mrb[0].mxu0 %v2098
      %v2161 = vpop.f32.mrb[0].mxu0
      %v2162 = vadd.f32 0.0, %v2161
      %v2163 = vpop.f32.mrb[0].mxu0
      %v2164 = vpop.f32.mrb[0].mxu0
      %v2165 = vadd.f32 0.0, %v2164
      %v2166 = vpop.f32.mrb[0].mxu0
      %2167 = vdwg.mxu0
      %v2168 = vadd.f32 %v2011, %v2138
      %v2169 = vadd.f32 %v2014, %v2141
      %v2170 = vadd.f32 %v2019, %v2146
      %v2171 = vadd.f32 %v2022, %v2149
      %v2172 = vadd.f32 %v2027, %v2154
      %v2173 = vadd.f32 %v2030, %v2157
      %v2174 = vadd.f32 %v2035, %v2162
      %v2175 = vadd.f32 %v2038, %v2165
      %v2176 = vld [vmem:[%s2] sm:$0x1]
      %v2178 = vlaneseq
      %v2179 = vshrl.u32 %v2178, 7
      %v2180 = vsub.s32 0, %v2179
      %v2181 = vrot.slane %v2176, %v2180
      %v2183 = vadd.f32 %v2168, %v2181
      %v2184 = vadd.f32 %v2169, %v2181
      %v2185 = vadd.f32 %v2170, %v2181
      %v2186 = vadd.f32 %v2171, %v2181
      %v2187 = vadd.f32 %v2172, %v2181
      %v2188 = vadd.f32 %v2173, %v2181
      %v2189 = vadd.f32 %v2174, %v2181
      %v2190 = vadd.f32 %v2175, %v2181
      %v2191 = vmax.f32 %v2183, 0.0
      %v2192 = vmax.f32 %v2184, 0.0
      %v2193 = vmax.f32 %v2185, 0.0
      %v2194 = vmax.f32 %v2186, 0.0
      %v2195 = vmax.f32 %v2187, 0.0
      %v2196 = vmax.f32 %v2188, 0.0
      %v2197 = vmax.f32 %v2189, 0.0
      %v2198 = vmax.f32 %v2190, 0.0
      %v2207 = vcombine.high %v2191, %v2191
      %v2208 = vcombine.high %v2192, %v2192
      %v2209 = vcombine.high %v2193, %v2193
      %v2210 = vcombine.high %v2194, %v2194
      %v2211 = vcombine.high %v2195, %v2195
      %v2212 = vcombine.high %v2196, %v2196
      %v2213 = vcombine.high %v2197, %v2197
      %v2214 = vcombine.high %v2198, %v2198
      %v2223 = vrot.slane %v2207, 7
      %v2224 = vrot.slane %v2208, 7
      %v2225 = vrot.slane %v2209, 7
      %v2226 = vrot.slane %v2210, 7
      %v2227 = vrot.slane %v2211, 7
      %v2228 = vrot.slane %v2212, 7
      %v2229 = vrot.slane %v2213, 7
      %v2230 = vrot.slane %v2214, 7
      %v2239 = vsel %vm654, 0.0, %v2223
      %v2240 = vsel %vm654, 0.0, %v2224
      %v2241 = vsel %vm654, 0.0, %v2225
      %v2242 = vsel %vm654, 0.0, %v2226
      %v2243 = vsel %vm654, 0.0, %v2227
      %v2244 = vsel %vm654, 0.0, %v2228
      %v2245 = vsel %vm654, 0.0, %v2229
      %v2246 = vsel %vm654, 0.0, %v2230
      %v2247 = vmax.f32 %v2191, %v2207
      %v2248 = vmax.f32 %v2192, %v2208
      %v2249 = vmax.f32 %v2193, %v2209
      %v2250 = vmax.f32 %v2194, %v2210
      %v2251 = vmax.f32 %v2195, %v2211
      %v2252 = vmax.f32 %v2196, %v2212
      %v2253 = vmax.f32 %v2197, %v2213
      %v2254 = vmax.f32 %v2198, %v2214
      %v2255 = vmax.f32 %v2247, %v2239
      %v2256 = vmax.f32 %v2248, %v2240
      %v2257 = vmax.f32 %v2249, %v2241
      %v2258 = vmax.f32 %v2250, %v2242
      %v2259 = vmax.f32 %v2251, %v2243
      %v2260 = vmax.f32 %v2252, %v2244
      %v2261 = vmax.f32 %v2253, %v2245
      %v2262 = vmax.f32 %v2254, %v2246
      %v2263 = vmax.f32 %v2255, %v2256
      %v2264 = vmax.f32 %v2257, %v2258
      %v2265 = vmax.f32 %v2259, %v2260
      %v2266 = vmax.f32 %v2261, %v2262
      %v2267 = vmax.f32 %v2263, 0.0
      %v2268 = vmax.f32 %v2264, %v2256
      %v2269 = vmax.f32 %v2265, %v2258
      %v2270 = vmax.f32 %v2266, %v2260
      %v2271 = vcombine.low %v2267, %v2269
      %v2273 = vunpack.c.l.s4 1983009808
      %v2274 = vunpack.c.0.s8 %v2273
      %v2275 = vlaneseq
      %v2276 = vshrl.u32 %v2275, 7
      %v2277 = vsub.s32 %v2274, %v2276
      %v2278 = vrot.slane %v2271, %v2277
      %v2279 = vcombine.low %v2268, %v2270
      %v2281 = vunpack.c.l.s4 1983009808
      %v2282 = vunpack.c.0.s8 %v2281
      %v2283 = vlaneseq
      %v2284 = vshrl.u32 %v2283, 7
      %v2285 = vsub.s32 %v2282, %v2284
      %v2286 = vrot.slane %v2279, %v2285
      %v2287 = vcombine.low %v2278, %v2286
      %v2288 = vcombine.high %v2278, %v2286
      %v2290 = vunpack.c.l.s4 1934713408
      %v2291 = vunpack.c.0.s8 %v2290
      %v2292 = vlaneseq
      %v2293 = vshrl.u32 %v2292, 7
      %v2294 = vsub.s32 %v2291, %v2293
      %v2295 = vrot.slane %v2287, %v2294
      %v2297 = vunpack.c.l.s4 1934713408
      %v2298 = vunpack.c.0.s8 %v2297
      %v2299 = vlaneseq
      %v2300 = vshrl.u32 %v2299, 7
      %v2301 = vsub.s32 %v2298, %v2300
      %v2302 = vrot.slane %v2288, %v2301
      %v2303 = vcombine.high %v2295, 0.0
      %v2304 = vcombine.high %v2302, 0.0
      %2306 = vrot.lane.b32.xlu0 %v2303, 8
      %v2307 = vpop.permute.xlu0 %2306
      %2310 = vrot.lane.b32.xlu0 %v2302, 16
      %v2311 = vpop.permute.xlu0 %2310
      %2314 = vrot.lane.b32.xlu0 %v2304, 24
      %v2315 = vpop.permute.xlu0 %2314
      %v2317 = vsel %vm733, %v2295, %v2307
      %v2318 = vsel %vm735, %v2317, %v2311
      %v2319 = vsel %vm737, %v2318, %v2315
      %s2320 = scalar_lea.vmem %s192, 12
      %2321 = vst.msk [vmem:[%s2320] sm:$0xf] %vm739, %v2319
      %s2322 = smul.u32 4, %s19
      %p2323 = scmp.lt.s32.totalorder %s18, 1
      %s2324 = scalar_select %p2323, %s18, 1
      %p2325 = scmp.lt.s32.totalorder %s2322, 3
      %s2326 = scalar_select %p2325, %s2322, 3
      %s2327 = smul.addr %s2324, 4
      %s2328 = sadd.s32 %s2326, %s2327
      %s2329 = smul.addr %s2328, 4
      %s2330 = scalar_lea.vmem %s3, %s2329
      // Predicated region
      $region33: #{resnet_basic_stem_forward.1} parent=31 // pred_check
        %p2331 = pneg %p114
      $region34: #{resnet_basic_stem_forward.1} parent=31 // pred_check_branch
        %2333 = sbr.rel (%p2331) target = $region36
      $region35: #{resnet_basic_stem_forward.1} parent=31 // pred_region
        %s2334 = smul.u32 4, %s19
      $region36: #{resnet_basic_stem_forward.1} parent=31 // pred_fallthru
        _
    $region32: #{resnet_basic_stem_forward.1} parent=5 // pred_fallthru
      _
    %p2335 = scmp.le.s32.totalorder 2, %s9
    // Predicated region
    $region37: #{resnet_basic_stem_forward.1} parent=5 // pred_check
      %p2336 = pneg %p2335
    $region38: #{resnet_basic_stem_forward.1} parent=5 // pred_check_branch
      %2338 = sbr.rel (%p2336) target = $region40
    $region39: #{resnet_basic_stem_forward.1} parent=5 // pred_region
      %s2339 = ssub.s32 %s9, 2
      // Predicated region
      $region41: #{resnet_basic_stem_forward.1} parent=39 // pred_check
        %p2340 = pneg %p120
      $region42: #{resnet_basic_stem_forward.1} parent=39 // pred_check_branch
        %2342 = sbr.rel (%p2340) target = $region44
      $region43: #{resnet_basic_stem_forward.1} parent=39 // pred_region
        %s2343 = smul.u32 4, %s21
        %p2344 = scmp.lt.s32.totalorder %s20, 1
        %s2345 = scalar_select %p2344, %s20, 1
        %p2346 = scmp.lt.s32.totalorder %s2343, 3
        %s2347 = scalar_select %p2346, %s2343, 3
        %s2348 = smul.addr %s2345, 4
        %s2349 = sadd.s32 %s2347, %s2348
        %s2350 = smul.addr %s2349, 4
        %s2351 = scalar_lea.vmem %s3, %s2350
      $region44: #{resnet_basic_stem_forward.1} parent=39 // pred_fallthru
        _
    $region40: #{resnet_basic_stem_forward.1} parent=5 // pred_fallthru
      _
  $region6: #{resnet_basic_stem_forward.1} parent=0 // loop_footer
    %s13 = sadd.s32 1, %s9
  $region7: #{resnet_basic_stem_forward.1} parent=0 // loop_footer_branch
    %8 = sbr.rel target = $region3
  $region8: #{resnet_basic_stem_forward.1} parent=0 // loop_exit
    _

</llo_original>
